<compile_context>
chip_gen: v7x
topology: tpu7x:2x2x1
jax: 0.10.0
libtpu: 0.0.40
codegen_flags: <defaults>
</compile_context>

<pallas_src>
import functools

import jax
import jax.numpy as jnp
from jax.experimental import pallas as pl
from jax.experimental.pallas import tpu as pltpu


def _nbefrc_kernel(u_ref, w_ref, bias_ref, h0_ref, o_ref,
                   hf_sc, hs_sc, *, mem_sz, tl, dt):
    """One grid step == `tl` recurrence steps.

    u_ref    : (tl, B, in_sz)          time slice of the input
    w_ref    : (in_sz + mem_sz, 6*mem_sz)  fused [W_im^T ; W_mm^T|0]
    bias_ref : (B, 6*mem_sz)           pre-broadcast fused bias
    h0_ref   : (2, B, mem_sz)          initial (hf, hs)
    o_ref    : (1, B, tl*mem_sz)       lane-dense hf output slab
    hf_sc/hs_sc : (B, mem_sz) VMEM carries across grid steps
    """
    @pl.when(pl.program_id(0) == 0)
    def _():
        hf_sc[...] = h0_ref[0]
        hs_sc[...] = h0_ref[1]

    M = mem_sz
    w = w_ref[...]          # loaded once per grid step (loop-invariant)
    bias = bias_ref[...]    # already (B, 6M): no in-loop broadcast

    hf = hf_sc[...]
    hs = hs_sc[...]

    # Statically unrolled time loop inside the grid step (tl is small).
    for j in range(tl):
        x = u_ref[j]                                        # (B, in_sz)
        xz = jnp.concatenate([x, hf], axis=1)               # (B, in_sz+M)
        # Single fused MXU matmul: i_g + m_g sums happen in the accumulator.
        emb = jnp.dot(xz, w, preferred_element_type=jnp.float32) + bias

        # Packed non-linearities: one tanh over a|b, one sigmoid over c|d|e.
        t_ab = jnp.tanh(emb[:, 0:2 * M])
        s_cde = jax.nn.sigmoid(emb[:, 2 * M:5 * M])
        i_o = emb[:, 5 * M:6 * M]

        a = 1.0 + t_ab[:, 0:M]
        b = 1.5 * (1.0 + t_ab[:, M:2 * M])
        c = 3.0 * dt + (1.0 - 3.0 * dt) * s_cde[:, 0:M]
        d = 0.3 * dt * s_cde[:, M:2 * M]
        e = 1.0 + s_cde[:, 2 * M:3 * M]

        hfn = (1.0 - c) * hf + c * jnp.tanh(i_o + (a + b * hf * hf - hs) * hf)
        hsn = hs * (1.0 - d) + d * (e * hf) ** 4

        # Pack step j into the lane-dense output slab (static slice).
        o_ref[0, :, j * M:(j + 1) * M] = hfn.astype(o_ref.dtype)

        hf, hs = hfn, hsn

    hf_sc[...] = hf
    hs_sc[...] = hs


def nbefrc_forward(u, w_im, b_im, w_mm, b_mm, h0=None, dt=0.1, max_tl=32):
    """u: (B, L, in_sz); w_im: (6*mem_sz, in_sz); w_mm: (5*mem_sz, mem_sz).

    Returns (h_seq, h_last) matching the PyTorch forward (mem=False):
      h_seq: (B, L, mem_sz) of hf states, h_last: (B, 1, mem_sz).
    """
    B, L, in_sz = u.shape
    mem_sz = w_mm.shape[1]
    assert w_im.shape == (6 * mem_sz, in_sz)
    assert w_mm.shape == (5 * mem_sz, mem_sz)

    # Pick the largest time-chunk TL <= max_tl that divides L.
    tl = 1
    for cand in range(min(L, max_tl), 0, -1):
        if L % cand == 0:
            tl = cand
            break
    nt = L // tl

    # Time-major input so the sequential grid axis is the leading dim.
    u_t = jnp.transpose(u, (1, 0, 2)).astype(jnp.float32)      # (L, B, in_sz)

    # Fused weight: rows [0:in_sz] = W_im^T (all 6 gate blocks),
    #               rows [in_sz:in_sz+M] = W_mm^T for gates a..e, zeros for o.
    wim_t = jnp.transpose(w_im).astype(jnp.float32)             # (in_sz, 6M)
    wmm_t = jnp.transpose(w_mm).astype(jnp.float32)             # (M, 5M)
    wmm_pad = jnp.concatenate(
        [wmm_t, jnp.zeros((mem_sz, mem_sz), jnp.float32)], axis=1)  # (M, 6M)
    w_fused = jnp.concatenate([wim_t, wmm_pad], axis=0)         # (in_sz+M, 6M)

    # Fused bias, pre-broadcast to (B, 6M) so the kernel never broadcasts.
    bias_fused = (b_im.astype(jnp.float32)
                  + jnp.concatenate([b_mm.astype(jnp.float32),
                                     jnp.zeros((mem_sz,), jnp.float32)]))
    bias_b = jnp.broadcast_to(bias_fused[None, :], (B, 6 * mem_sz))

    if h0 is None:
        h0 = jnp.zeros((2, B, mem_sz), dtype=jnp.float32)
    h0 = h0.astype(jnp.float32)

    kernel = functools.partial(_nbefrc_kernel, mem_sz=mem_sz, tl=tl, dt=dt)

    hf_slab = pl.pallas_call(
        kernel,
        out_shape=jax.ShapeDtypeStruct((nt, B, tl * mem_sz), jnp.float32),
        grid_spec=pltpu.PrefetchScalarGridSpec(
            num_scalar_prefetch=0,
            grid=(nt,),
            in_specs=[
                pl.BlockSpec((tl, B, in_sz), lambda t: (t, 0, 0)),          # u chunk
                pl.BlockSpec((in_sz + mem_sz, 6 * mem_sz), lambda t: (0, 0)),  # W_fused
                pl.BlockSpec((B, 6 * mem_sz), lambda t: (0, 0)),            # bias (B,6M)
                pl.BlockSpec((2, B, mem_sz), lambda t: (0, 0, 0)),          # h0
            ],
            out_specs=pl.BlockSpec((1, B, tl * mem_sz), lambda t: (t, 0, 0)),
            scratch_shapes=[
                pltpu.VMEM((B, mem_sz), jnp.float32),                       # hf carry
                pltpu.VMEM((B, mem_sz), jnp.float32),                       # hs carry
            ],
        ),
        compiler_params=pltpu.CompilerParams(
            dimension_semantics=("arbitrary",),   # sequential recurrence
        ),
    )(u_t, w_fused, bias_b, h0)

    # (nt, B, tl*M) -> (B, L, M)
    h_seq = (hf_slab.reshape(nt, B, tl, mem_sz)
             .transpose(1, 0, 2, 3)
             .reshape(B, L, mem_sz))
    h_last = h_seq[:, -1:, :]
    return h_seq, h_last


def _reference_forward(u, w_im, b_im, w_mm, b_mm, dt=0.1):
    """Pure-JAX reference mirroring the PyTorch loop (mem=False)."""
    B, L, _ = u.shape
    mem_sz = w_mm.shape[1]
    hf = jnp.zeros((B, mem_sz), jnp.float32)
    hs = jnp.zeros((B, mem_sz), jnp.float32)
    outs = []
    for i in range(L):
        x = u[:, i].astype(jnp.float32)
        in_emb = x @ w_im.T + b_im
        mem_emb = hf @ w_mm.T + b_mm
        i_a, i_b, i_c, i_d, i_e, i_o = jnp.split(in_emb, 6, axis=1)
        m_a, m_b, m_c, m_d, m_e = jnp.split(mem_emb, 5, axis=1)
        a = 1 + jnp.tanh(i_a + m_a)
        b = 1.5 * (1 + jnp.tanh(i_b + m_b))
        c = 3 * dt + (1 - 3 * dt) * jax.nn.sigmoid(i_c + m_c)
        d = 0.3 * dt * jax.nn.sigmoid(i_d + m_d)
        e = 1 + jax.nn.sigmoid(i_e + m_e)
        hfn = (1 - c) * hf + c * jnp.tanh(i_o + (a + b * hf ** 2 - hs) * hf)
        hsn = hs * (1 - d) + d * (e * hf) ** 4
        hf, hs = hfn, hsn
        outs.append(hf[:, None, :])
    h_seq = jnp.concatenate(outs, axis=1)
    return h_seq, h_seq[:, -1:, :]


if __name__ == "__main__":
    # Small shapes consistent with the module: batch=8, seq=8, in_sz=16, mem_sz=32.
    B, L, in_sz, mem_sz = 8, 8, 16, 32
    dt = 0.1

    key = jax.random.PRNGKey(0)
    k_u, k_wi, k_bi, k_wm, k_bm = jax.random.split(key, 5)

    u = jax.random.normal(k_u, (B, L, in_sz), dtype=jnp.float32)
    # Deterministic parameter init (scaled like nn.Linear's uniform fan-in init).
    w_im = jax.random.uniform(k_wi, (6 * mem_sz, in_sz), jnp.float32,
                              minval=-1.0, maxval=1.0) / jnp.sqrt(in_sz)
    b_im = jax.random.uniform(k_bi, (6 * mem_sz,), jnp.float32,
                              minval=-1.0, maxval=1.0) / jnp.sqrt(in_sz)
    w_mm = jax.random.uniform(k_wm, (5 * mem_sz, mem_sz), jnp.float32,
                              minval=-1.0, maxval=1.0) / jnp.sqrt(mem_sz)
    b_mm = jax.random.uniform(k_bm, (5 * mem_sz,), jnp.float32,
                              minval=-1.0, maxval=1.0) / jnp.sqrt(mem_sz)

    ref_seq, ref_last = _reference_forward(u, w_im, b_im, w_mm, b_mm, dt=dt)

    # 1) Default chunking: TL = L -> whole recurrence in a single grid step.
    h_seq, h_last = jax.block_until_ready(
        nbefrc_forward(u, w_im, b_im, w_mm, b_mm, dt=dt))
    assert h_seq.shape == (B, L, mem_sz)
    assert h_last.shape == (B, 1, mem_sz)
    assert jnp.allclose(h_seq, ref_seq, atol=1e-4, rtol=1e-4)
    assert jnp.allclose(h_last, ref_last, atol=1e-4, rtol=1e-4)

    # 2) Multi-chunk path (exercises the VMEM hf/hs carry across grid steps).
    h_seq2, h_last2 = jax.block_until_ready(
        nbefrc_forward(u, w_im, b_im, w_mm, b_mm, dt=dt, max_tl=2))
    assert jnp.allclose(h_seq2, ref_seq, atol=1e-4, rtol=1e-4)
    assert jnp.allclose(h_last2, ref_last, atol=1e-4, rtol=1e-4)

    print("KERNEL_OK")
</pallas_src>

<mosaic_0001>
module attributes {stable_mosaic.version = 11 : i64} {
  func.func @_nbefrc_kernel(%arg0: i32, %arg1: memref<8x8x16xf32, #tpu.memory_space<vmem>>, %arg2: memref<48x192xf32, #tpu.memory_space<vmem>>, %arg3: memref<8x192xf32, #tpu.memory_space<vmem>>, %arg4: memref<2x8x32xf32, #tpu.memory_space<vmem>>, %arg5: memref<1x8x256xf32, #tpu.memory_space<vmem>>, %arg6: memref<8x32xf32, #tpu.memory_space<vmem>>, %arg7: memref<8x32xf32, #tpu.memory_space<vmem>>) attributes {dimension_semantics = [#tpu.dimension_semantics<arbitrary>], iteration_bounds = array<i64: 1>, scalar_prefetch = 0 : i64, scratch_operands = 2 : i64, tpu.core_type = #tpu.core_type<tc>, window_params = [{transform_indices = @transform_0, window_bounds = array<i64: 8, 8, 16>}, {pipeline_mode = #tpu.pipeline_mode<synchronous>, transform_indices = @transform_1, window_bounds = array<i64: 48, 192>}, {pipeline_mode = #tpu.pipeline_mode<synchronous>, transform_indices = @transform_2, window_bounds = array<i64: 8, 192>}, {pipeline_mode = #tpu.pipeline_mode<synchronous>, transform_indices = @transform_3, window_bounds = array<i64: 2, 8, 32>}, {transform_indices = @transform_4, window_bounds = array<i64: 1, 8, 256>}]} {
    %c0_i32 = arith.constant 0 : i32
    %0 = arith.cmpi eq, %arg0, %c0_i32 : i32
    %1 = arith.extui %0 : i1 to i32
    %c0_i32_0 = arith.constant 0 : i32
    %2 = arith.cmpi ne, %1, %c0_i32_0 : i32
    scf.if %2 {
      %c0_133 = arith.constant 0 : index
      %c0_134 = arith.constant 0 : index
      %c0_135 = arith.constant 0 : index
      %457 = vector.load %arg4[%c0_133, %c0_134, %c0_135] : memref<2x8x32xf32, #tpu.memory_space<vmem>>, vector<1x8x32xf32>
      %458 = vector.shape_cast %457 : vector<1x8x32xf32> to vector<8x32xf32>
      %c0_136 = arith.constant 0 : index
      %c0_137 = arith.constant 0 : index
      %459 = vector.load %arg6[%c0_136, %c0_137] : memref<8x32xf32, #tpu.memory_space<vmem>>, vector<8x32xf32>
      tpu.vector_store %arg6[%c0_136, %c0_137], %458 {strides = array<i32>} : memref<8x32xf32, #tpu.memory_space<vmem>>, vector<8x32xf32>,
      %c1_138 = arith.constant 1 : index
      %c0_139 = arith.constant 0 : index
      %c0_140 = arith.constant 0 : index
      %460 = vector.load %arg4[%c1_138, %c0_139, %c0_140] : memref<2x8x32xf32, #tpu.memory_space<vmem>>, vector<1x8x32xf32>
      %461 = vector.shape_cast %460 : vector<1x8x32xf32> to vector<8x32xf32>
      %c0_141 = arith.constant 0 : index
      %c0_142 = arith.constant 0 : index
      %462 = vector.load %arg7[%c0_141, %c0_142] : memref<8x32xf32, #tpu.memory_space<vmem>>, vector<8x32xf32>
      tpu.vector_store %arg7[%c0_141, %c0_142], %461 {strides = array<i32>} : memref<8x32xf32, #tpu.memory_space<vmem>>, vector<8x32xf32>,
    } else {
    }
    %c0 = arith.constant 0 : index
    %c0_1 = arith.constant 0 : index
    %3 = vector.load %arg2[%c0, %c0_1] : memref<48x192xf32, #tpu.memory_space<vmem>>, vector<48x192xf32>
    %c0_2 = arith.constant 0 : index
    %c0_3 = arith.constant 0 : index
    %4 = vector.load %arg3[%c0_2, %c0_3] : memref<8x192xf32, #tpu.memory_space<vmem>>, vector<8x192xf32>
    %c0_4 = arith.constant 0 : index
    %c0_5 = arith.constant 0 : index
    %5 = vector.load %arg6[%c0_4, %c0_5] : memref<8x32xf32, #tpu.memory_space<vmem>>, vector<8x32xf32>
    %c0_6 = arith.constant 0 : index
    %c0_7 = arith.constant 0 : index
    %6 = vector.load %arg7[%c0_6, %c0_7] : memref<8x32xf32, #tpu.memory_space<vmem>>, vector<8x32xf32>
    %c0_8 = arith.constant 0 : index
    %c0_9 = arith.constant 0 : index
    %c0_10 = arith.constant 0 : index
    %7 = vector.load %arg1[%c0_8, %c0_9, %c0_10] : memref<8x8x16xf32, #tpu.memory_space<vmem>>, vector<1x8x16xf32>
    %8 = vector.shape_cast %7 : vector<1x8x16xf32> to vector<8x16xf32>
    %9 = tpu.concatenate %8, %5 in 1 : vector<8x16xf32>, vector<8x32xf32> -> vector<8x48xf32>
    %cst = arith.constant dense<0.000000e+00> : vector<8x192xf32>
    %10 = tpu.matmul %9, %3, %cst {dimension_numbers = #tpu.dot_dimension_numbers<[1], [0], [0], [1], [0, 0, 1, 1], [], []>} : vector<8x48xf32>, vector<48x192xf32>, vector<8x192xf32> -> vector<8x192xf32>
    %11 = arith.addf %10, %4 : vector<8x192xf32>
    %12 = vector.extract_strided_slice %11 {offsets = [0, 0], sizes = [8, 64], strides = [1, 1]} : vector<8x192xf32> to vector<8x64xf32>
    %13 = math.tanh %12 : vector<8x64xf32>
    %14 = vector.extract_strided_slice %11 {offsets = [0, 64], sizes = [8, 96], strides = [1, 1]} : vector<8x192xf32> to vector<8x96xf32>
    %15 = arith.negf %14 : vector<8x96xf32>
    %16 = math.exp %15 : vector<8x96xf32>
    %cst_11 = arith.constant 1.000000e+00 : f32
    %17 = vector.broadcast %cst_11 : f32 to vector<8x96xf32>
    %18 = arith.addf %17, %16 : vector<8x96xf32>
    %19 = arith.divf %17, %18 : vector<8x96xf32>
    %20 = vector.extract_strided_slice %11 {offsets = [0, 160], sizes = [8, 32], strides = [1, 1]} : vector<8x192xf32> to vector<8x32xf32>
    %21 = vector.extract_strided_slice %13 {offsets = [0, 0], sizes = [8, 32], strides = [1, 1]} : vector<8x64xf32> to vector<8x32xf32>
    %cst_12 = arith.constant 1.000000e+00 : f32
    %22 = vector.broadcast %cst_12 : f32 to vector<8x32xf32>
    %23 = arith.addf %22, %21 : vector<8x32xf32>
    %24 = vector.extract_strided_slice %13 {offsets = [0, 32], sizes = [8, 32], strides = [1, 1]} : vector<8x64xf32> to vector<8x32xf32>
    %cst_13 = arith.constant 1.000000e+00 : f32
    %25 = vector.broadcast %cst_13 : f32 to vector<8x32xf32>
    %26 = arith.addf %25, %24 : vector<8x32xf32>
    %cst_14 = arith.constant 1.500000e+00 : f32
    %27 = vector.broadcast %cst_14 : f32 to vector<8x32xf32>
    %28 = arith.mulf %27, %26 : vector<8x32xf32>
    %29 = vector.extract_strided_slice %19 {offsets = [0, 0], sizes = [8, 32], strides = [1, 1]} : vector<8x96xf32> to vector<8x32xf32>
    %cst_15 = arith.constant 0.699999988 : f32
    %30 = vector.broadcast %cst_15 : f32 to vector<8x32xf32>
    %31 = arith.mulf %30, %29 : vector<8x32xf32>
    %cst_16 = arith.constant 3.000000e-01 : f32
    %32 = vector.broadcast %cst_16 : f32 to vector<8x32xf32>
    %33 = arith.addf %32, %31 : vector<8x32xf32>
    %34 = vector.extract_strided_slice %19 {offsets = [0, 32], sizes = [8, 32], strides = [1, 1]} : vector<8x96xf32> to vector<8x32xf32>
    %cst_17 = arith.constant 3.000000e-02 : f32
    %35 = vector.broadcast %cst_17 : f32 to vector<8x32xf32>
    %36 = arith.mulf %35, %34 : vector<8x32xf32>
    %37 = vector.extract_strided_slice %19 {offsets = [0, 64], sizes = [8, 32], strides = [1, 1]} : vector<8x96xf32> to vector<8x32xf32>
    %cst_18 = arith.constant 1.000000e+00 : f32
    %38 = vector.broadcast %cst_18 : f32 to vector<8x32xf32>
    %39 = arith.addf %38, %37 : vector<8x32xf32>
    %cst_19 = arith.constant 1.000000e+00 : f32
    %40 = vector.broadcast %cst_19 : f32 to vector<8x32xf32>
    %41 = arith.subf %40, %33 : vector<8x32xf32>
    %42 = arith.mulf %41, %5 : vector<8x32xf32>
    %43 = arith.mulf %28, %5 : vector<8x32xf32>
    %44 = arith.mulf %43, %5 : vector<8x32xf32>
    %45 = arith.addf %23, %44 : vector<8x32xf32>
    %46 = arith.subf %45, %6 : vector<8x32xf32>
    %47 = arith.mulf %46, %5 : vector<8x32xf32>
    %48 = arith.addf %20, %47 : vector<8x32xf32>
    %49 = math.tanh %48 : vector<8x32xf32>
    %50 = arith.mulf %33, %49 : vector<8x32xf32>
    %51 = arith.addf %42, %50 : vector<8x32xf32>
    %cst_20 = arith.constant 1.000000e+00 : f32
    %52 = vector.broadcast %cst_20 : f32 to vector<8x32xf32>
    %53 = arith.subf %52, %36 : vector<8x32xf32>
    %54 = arith.mulf %6, %53 : vector<8x32xf32>
    %55 = arith.mulf %39, %5 : vector<8x32xf32>
    %56 = arith.mulf %55, %55 : vector<8x32xf32>
    %57 = arith.mulf %56, %56 : vector<8x32xf32>
    %58 = arith.mulf %36, %57 : vector<8x32xf32>
    %59 = arith.addf %54, %58 : vector<8x32xf32>
    %c0_21 = arith.constant 0 : index
    %c0_22 = arith.constant 0 : index
    %c0_23 = arith.constant 0 : index
    %60 = vector.load %arg5[%c0_21, %c0_22, %c0_23] : memref<1x8x256xf32, #tpu.memory_space<vmem>>, vector<1x8x32xf32>
    %61 = vector.shape_cast %60 : vector<1x8x32xf32> to vector<8x32xf32>
    %62 = vector.shape_cast %51 : vector<8x32xf32> to vector<1x8x32xf32>
    tpu.vector_store %arg5[%c0_21, %c0_22, %c0_23], %62 {strides = array<i32>} : memref<1x8x256xf32, #tpu.memory_space<vmem>>, vector<1x8x32xf32>,
    %c1 = arith.constant 1 : index
    %c0_24 = arith.constant 0 : index
    %c0_25 = arith.constant 0 : index
    %63 = vector.load %arg1[%c1, %c0_24, %c0_25] : memref<8x8x16xf32, #tpu.memory_space<vmem>>, vector<1x8x16xf32>
    %64 = vector.shape_cast %63 : vector<1x8x16xf32> to vector<8x16xf32>
    %65 = tpu.concatenate %64, %51 in 1 : vector<8x16xf32>, vector<8x32xf32> -> vector<8x48xf32>
    %cst_26 = arith.constant dense<0.000000e+00> : vector<8x192xf32>
    %66 = tpu.matmul %65, %3, %cst_26 {dimension_numbers = #tpu.dot_dimension_numbers<[1], [0], [0], [1], [0, 0, 1, 1], [], []>} : vector<8x48xf32>, vector<48x192xf32>, vector<8x192xf32> -> vector<8x192xf32>
    %67 = arith.addf %66, %4 : vector<8x192xf32>
    %68 = vector.extract_strided_slice %67 {offsets = [0, 0], sizes = [8, 64], strides = [1, 1]} : vector<8x192xf32> to vector<8x64xf32>
    %69 = math.tanh %68 : vector<8x64xf32>
    %70 = vector.extract_strided_slice %67 {offsets = [0, 64], sizes = [8, 96], strides = [1, 1]} : vector<8x192xf32> to vector<8x96xf32>
    %71 = arith.negf %70 : vector<8x96xf32>
    %72 = math.exp %71 : vector<8x96xf32>
    %cst_27 = arith.constant 1.000000e+00 : f32
    %73 = vector.broadcast %cst_27 : f32 to vector<8x96xf32>
    %74 = arith.addf %73, %72 : vector<8x96xf32>
    %75 = arith.divf %73, %74 : vector<8x96xf32>
    %76 = vector.extract_strided_slice %67 {offsets = [0, 160], sizes = [8, 32], strides = [1, 1]} : vector<8x192xf32> to vector<8x32xf32>
    %77 = vector.extract_strided_slice %69 {offsets = [0, 0], sizes = [8, 32], strides = [1, 1]} : vector<8x64xf32> to vector<8x32xf32>
    %cst_28 = arith.constant 1.000000e+00 : f32
    %78 = vector.broadcast %cst_28 : f32 to vector<8x32xf32>
    %79 = arith.addf %78, %77 : vector<8x32xf32>
    %80 = vector.extract_strided_slice %69 {offsets = [0, 32], sizes = [8, 32], strides = [1, 1]} : vector<8x64xf32> to vector<8x32xf32>
    %cst_29 = arith.constant 1.000000e+00 : f32
    %81 = vector.broadcast %cst_29 : f32 to vector<8x32xf32>
    %82 = arith.addf %81, %80 : vector<8x32xf32>
    %cst_30 = arith.constant 1.500000e+00 : f32
    %83 = vector.broadcast %cst_30 : f32 to vector<8x32xf32>
    %84 = arith.mulf %83, %82 : vector<8x32xf32>
    %85 = vector.extract_strided_slice %75 {offsets = [0, 0], sizes = [8, 32], strides = [1, 1]} : vector<8x96xf32> to vector<8x32xf32>
    %cst_31 = arith.constant 0.699999988 : f32
    %86 = vector.broadcast %cst_31 : f32 to vector<8x32xf32>
    %87 = arith.mulf %86, %85 : vector<8x32xf32>
    %cst_32 = arith.constant 3.000000e-01 : f32
    %88 = vector.broadcast %cst_32 : f32 to vector<8x32xf32>
    %89 = arith.addf %88, %87 : vector<8x32xf32>
    %90 = vector.extract_strided_slice %75 {offsets = [0, 32], sizes = [8, 32], strides = [1, 1]} : vector<8x96xf32> to vector<8x32xf32>
    %cst_33 = arith.constant 3.000000e-02 : f32
    %91 = vector.broadcast %cst_33 : f32 to vector<8x32xf32>
    %92 = arith.mulf %91, %90 : vector<8x32xf32>
    %93 = vector.extract_strided_slice %75 {offsets = [0, 64], sizes = [8, 32], strides = [1, 1]} : vector<8x96xf32> to vector<8x32xf32>
    %cst_34 = arith.constant 1.000000e+00 : f32
    %94 = vector.broadcast %cst_34 : f32 to vector<8x32xf32>
    %95 = arith.addf %94, %93 : vector<8x32xf32>
    %cst_35 = arith.constant 1.000000e+00 : f32
    %96 = vector.broadcast %cst_35 : f32 to vector<8x32xf32>
    %97 = arith.subf %96, %89 : vector<8x32xf32>
    %98 = arith.mulf %97, %51 : vector<8x32xf32>
    %99 = arith.mulf %84, %51 : vector<8x32xf32>
    %100 = arith.mulf %99, %51 : vector<8x32xf32>
    %101 = arith.addf %79, %100 : vector<8x32xf32>
    %102 = arith.subf %101, %59 : vector<8x32xf32>
    %103 = arith.mulf %102, %51 : vector<8x32xf32>
    %104 = arith.addf %76, %103 : vector<8x32xf32>
    %105 = math.tanh %104 : vector<8x32xf32>
    %106 = arith.mulf %89, %105 : vector<8x32xf32>
    %107 = arith.addf %98, %106 : vector<8x32xf32>
    %cst_36 = arith.constant 1.000000e+00 : f32
    %108 = vector.broadcast %cst_36 : f32 to vector<8x32xf32>
    %109 = arith.subf %108, %92 : vector<8x32xf32>
    %110 = arith.mulf %59, %109 : vector<8x32xf32>
    %111 = arith.mulf %95, %51 : vector<8x32xf32>
    %112 = arith.mulf %111, %111 : vector<8x32xf32>
    %113 = arith.mulf %112, %112 : vector<8x32xf32>
    %114 = arith.mulf %92, %113 : vector<8x32xf32>
    %115 = arith.addf %110, %114 : vector<8x32xf32>
    %c0_37 = arith.constant 0 : index
    %c0_38 = arith.constant 0 : index
    %c32 = arith.constant 32 : index
    %116 = vector.load %arg5[%c0_37, %c0_38, %c32] : memref<1x8x256xf32, #tpu.memory_space<vmem>>, vector<1x8x32xf32>
    %117 = vector.shape_cast %116 : vector<1x8x32xf32> to vector<8x32xf32>
    %118 = vector.shape_cast %107 : vector<8x32xf32> to vector<1x8x32xf32>
    tpu.vector_store %arg5[%c0_37, %c0_38, %c32], %118 {strides = array<i32>} : memref<1x8x256xf32, #tpu.memory_space<vmem>>, vector<1x8x32xf32>,
    %c2 = arith.constant 2 : index
    %c0_39 = arith.constant 0 : index
    %c0_40 = arith.constant 0 : index
    %119 = vector.load %arg1[%c2, %c0_39, %c0_40] : memref<8x8x16xf32, #tpu.memory_space<vmem>>, vector<1x8x16xf32>
    %120 = vector.shape_cast %119 : vector<1x8x16xf32> to vector<8x16xf32>
    %121 = tpu.concatenate %120, %107 in 1 : vector<8x16xf32>, vector<8x32xf32> -> vector<8x48xf32>
    %cst_41 = arith.constant dense<0.000000e+00> : vector<8x192xf32>
    %122 = tpu.matmul %121, %3, %cst_41 {dimension_numbers = #tpu.dot_dimension_numbers<[1], [0], [0], [1], [0, 0, 1, 1], [], []>} : vector<8x48xf32>, vector<48x192xf32>, vector<8x192xf32> -> vector<8x192xf32>
    %123 = arith.addf %122, %4 : vector<8x192xf32>
    %124 = vector.extract_strided_slice %123 {offsets = [0, 0], sizes = [8, 64], strides = [1, 1]} : vector<8x192xf32> to vector<8x64xf32>
    %125 = math.tanh %124 : vector<8x64xf32>
    %126 = vector.extract_strided_slice %123 {offsets = [0, 64], sizes = [8, 96], strides = [1, 1]} : vector<8x192xf32> to vector<8x96xf32>
    %127 = arith.negf %126 : vector<8x96xf32>
    %128 = math.exp %127 : vector<8x96xf32>
    %cst_42 = arith.constant 1.000000e+00 : f32
    %129 = vector.broadcast %cst_42 : f32 to vector<8x96xf32>
    %130 = arith.addf %129, %128 : vector<8x96xf32>
    %131 = arith.divf %129, %130 : vector<8x96xf32>
    %132 = vector.extract_strided_slice %123 {offsets = [0, 160], sizes = [8, 32], strides = [1, 1]} : vector<8x192xf32> to vector<8x32xf32>
    %133 = vector.extract_strided_slice %125 {offsets = [0, 0], sizes = [8, 32], strides = [1, 1]} : vector<8x64xf32> to vector<8x32xf32>
    %cst_43 = arith.constant 1.000000e+00 : f32
    %134 = vector.broadcast %cst_43 : f32 to vector<8x32xf32>
    %135 = arith.addf %134, %133 : vector<8x32xf32>
    %136 = vector.extract_strided_slice %125 {offsets = [0, 32], sizes = [8, 32], strides = [1, 1]} : vector<8x64xf32> to vector<8x32xf32>
    %cst_44 = arith.constant 1.000000e+00 : f32
    %137 = vector.broadcast %cst_44 : f32 to vector<8x32xf32>
    %138 = arith.addf %137, %136 : vector<8x32xf32>
    %cst_45 = arith.constant 1.500000e+00 : f32
    %139 = vector.broadcast %cst_45 : f32 to vector<8x32xf32>
    %140 = arith.mulf %139, %138 : vector<8x32xf32>
    %141 = vector.extract_strided_slice %131 {offsets = [0, 0], sizes = [8, 32], strides = [1, 1]} : vector<8x96xf32> to vector<8x32xf32>
    %cst_46 = arith.constant 0.699999988 : f32
    %142 = vector.broadcast %cst_46 : f32 to vector<8x32xf32>
    %143 = arith.mulf %142, %141 : vector<8x32xf32>
    %cst_47 = arith.constant 3.000000e-01 : f32
    %144 = vector.broadcast %cst_47 : f32 to vector<8x32xf32>
    %145 = arith.addf %144, %143 : vector<8x32xf32>
    %146 = vector.extract_strided_slice %131 {offsets = [0, 32], sizes = [8, 32], strides = [1, 1]} : vector<8x96xf32> to vector<8x32xf32>
    %cst_48 = arith.constant 3.000000e-02 : f32
    %147 = vector.broadcast %cst_48 : f32 to vector<8x32xf32>
    %148 = arith.mulf %147, %146 : vector<8x32xf32>
    %149 = vector.extract_strided_slice %131 {offsets = [0, 64], sizes = [8, 32], strides = [1, 1]} : vector<8x96xf32> to vector<8x32xf32>
    %cst_49 = arith.constant 1.000000e+00 : f32
    %150 = vector.broadcast %cst_49 : f32 to vector<8x32xf32>
    %151 = arith.addf %150, %149 : vector<8x32xf32>
    %cst_50 = arith.constant 1.000000e+00 : f32
    %152 = vector.broadcast %cst_50 : f32 to vector<8x32xf32>
    %153 = arith.subf %152, %145 : vector<8x32xf32>
    %154 = arith.mulf %153, %107 : vector<8x32xf32>
    %155 = arith.mulf %140, %107 : vector<8x32xf32>
    %156 = arith.mulf %155, %107 : vector<8x32xf32>
    %157 = arith.addf %135, %156 : vector<8x32xf32>
    %158 = arith.subf %157, %115 : vector<8x32xf32>
    %159 = arith.mulf %158, %107 : vector<8x32xf32>
    %160 = arith.addf %132, %159 : vector<8x32xf32>
    %161 = math.tanh %160 : vector<8x32xf32>
    %162 = arith.mulf %145, %161 : vector<8x32xf32>
    %163 = arith.addf %154, %162 : vector<8x32xf32>
    %cst_51 = arith.constant 1.000000e+00 : f32
    %164 = vector.broadcast %cst_51 : f32 to vector<8x32xf32>
    %165 = arith.subf %164, %148 : vector<8x32xf32>
    %166 = arith.mulf %115, %165 : vector<8x32xf32>
    %167 = arith.mulf %151, %107 : vector<8x32xf32>
    %168 = arith.mulf %167, %167 : vector<8x32xf32>
    %169 = arith.mulf %168, %168 : vector<8x32xf32>
    %170 = arith.mulf %148, %169 : vector<8x32xf32>
    %171 = arith.addf %166, %170 : vector<8x32xf32>
    %c0_52 = arith.constant 0 : index
    %c0_53 = arith.constant 0 : index
    %c64 = arith.constant 64 : index
    %172 = vector.load %arg5[%c0_52, %c0_53, %c64] : memref<1x8x256xf32, #tpu.memory_space<vmem>>, vector<1x8x32xf32>
    %173 = vector.shape_cast %172 : vector<1x8x32xf32> to vector<8x32xf32>
    %174 = vector.shape_cast %163 : vector<8x32xf32> to vector<1x8x32xf32>
    tpu.vector_store %arg5[%c0_52, %c0_53, %c64], %174 {strides = array<i32>} : memref<1x8x256xf32, #tpu.memory_space<vmem>>, vector<1x8x32xf32>,
    %c3 = arith.constant 3 : index
    %c0_54 = arith.constant 0 : index
    %c0_55 = arith.constant 0 : index
    %175 = vector.load %arg1[%c3, %c0_54, %c0_55] : memref<8x8x16xf32, #tpu.memory_space<vmem>>, vector<1x8x16xf32>
    %176 = vector.shape_cast %175 : vector<1x8x16xf32> to vector<8x16xf32>
    %177 = tpu.concatenate %176, %163 in 1 : vector<8x16xf32>, vector<8x32xf32> -> vector<8x48xf32>
    %cst_56 = arith.constant dense<0.000000e+00> : vector<8x192xf32>
    %178 = tpu.matmul %177, %3, %cst_56 {dimension_numbers = #tpu.dot_dimension_numbers<[1], [0], [0], [1], [0, 0, 1, 1], [], []>} : vector<8x48xf32>, vector<48x192xf32>, vector<8x192xf32> -> vector<8x192xf32>
    %179 = arith.addf %178, %4 : vector<8x192xf32>
    %180 = vector.extract_strided_slice %179 {offsets = [0, 0], sizes = [8, 64], strides = [1, 1]} : vector<8x192xf32> to vector<8x64xf32>
    %181 = math.tanh %180 : vector<8x64xf32>
    %182 = vector.extract_strided_slice %179 {offsets = [0, 64], sizes = [8, 96], strides = [1, 1]} : vector<8x192xf32> to vector<8x96xf32>
    %183 = arith.negf %182 : vector<8x96xf32>
    %184 = math.exp %183 : vector<8x96xf32>
    %cst_57 = arith.constant 1.000000e+00 : f32
    %185 = vector.broadcast %cst_57 : f32 to vector<8x96xf32>
    %186 = arith.addf %185, %184 : vector<8x96xf32>
    %187 = arith.divf %185, %186 : vector<8x96xf32>
    %188 = vector.extract_strided_slice %179 {offsets = [0, 160], sizes = [8, 32], strides = [1, 1]} : vector<8x192xf32> to vector<8x32xf32>
    %189 = vector.extract_strided_slice %181 {offsets = [0, 0], sizes = [8, 32], strides = [1, 1]} : vector<8x64xf32> to vector<8x32xf32>
    %cst_58 = arith.constant 1.000000e+00 : f32
    %190 = vector.broadcast %cst_58 : f32 to vector<8x32xf32>
    %191 = arith.addf %190, %189 : vector<8x32xf32>
    %192 = vector.extract_strided_slice %181 {offsets = [0, 32], sizes = [8, 32], strides = [1, 1]} : vector<8x64xf32> to vector<8x32xf32>
    %cst_59 = arith.constant 1.000000e+00 : f32
    %193 = vector.broadcast %cst_59 : f32 to vector<8x32xf32>
    %194 = arith.addf %193, %192 : vector<8x32xf32>
    %cst_60 = arith.constant 1.500000e+00 : f32
    %195 = vector.broadcast %cst_60 : f32 to vector<8x32xf32>
    %196 = arith.mulf %195, %194 : vector<8x32xf32>
    %197 = vector.extract_strided_slice %187 {offsets = [0, 0], sizes = [8, 32], strides = [1, 1]} : vector<8x96xf32> to vector<8x32xf32>
    %cst_61 = arith.constant 0.699999988 : f32
    %198 = vector.broadcast %cst_61 : f32 to vector<8x32xf32>
    %199 = arith.mulf %198, %197 : vector<8x32xf32>
    %cst_62 = arith.constant 3.000000e-01 : f32
    %200 = vector.broadcast %cst_62 : f32 to vector<8x32xf32>
    %201 = arith.addf %200, %199 : vector<8x32xf32>
    %202 = vector.extract_strided_slice %187 {offsets = [0, 32], sizes = [8, 32], strides = [1, 1]} : vector<8x96xf32> to vector<8x32xf32>
    %cst_63 = arith.constant 3.000000e-02 : f32
    %203 = vector.broadcast %cst_63 : f32 to vector<8x32xf32>
    %204 = arith.mulf %203, %202 : vector<8x32xf32>
    %205 = vector.extract_strided_slice %187 {offsets = [0, 64], sizes = [8, 32], strides = [1, 1]} : vector<8x96xf32> to vector<8x32xf32>
    %cst_64 = arith.constant 1.000000e+00 : f32
    %206 = vector.broadcast %cst_64 : f32 to vector<8x32xf32>
    %207 = arith.addf %206, %205 : vector<8x32xf32>
    %cst_65 = arith.constant 1.000000e+00 : f32
    %208 = vector.broadcast %cst_65 : f32 to vector<8x32xf32>
    %209 = arith.subf %208, %201 : vector<8x32xf32>
    %210 = arith.mulf %209, %163 : vector<8x32xf32>
    %211 = arith.mulf %196, %163 : vector<8x32xf32>
    %212 = arith.mulf %211, %163 : vector<8x32xf32>
    %213 = arith.addf %191, %212 : vector<8x32xf32>
    %214 = arith.subf %213, %171 : vector<8x32xf32>
    %215 = arith.mulf %214, %163 : vector<8x32xf32>
    %216 = arith.addf %188, %215 : vector<8x32xf32>
    %217 = math.tanh %216 : vector<8x32xf32>
    %218 = arith.mulf %201, %217 : vector<8x32xf32>
    %219 = arith.addf %210, %218 : vector<8x32xf32>
    %cst_66 = arith.constant 1.000000e+00 : f32
    %220 = vector.broadcast %cst_66 : f32 to vector<8x32xf32>
    %221 = arith.subf %220, %204 : vector<8x32xf32>
    %222 = arith.mulf %171, %221 : vector<8x32xf32>
    %223 = arith.mulf %207, %163 : vector<8x32xf32>
    %224 = arith.mulf %223, %223 : vector<8x32xf32>
    %225 = arith.mulf %224, %224 : vector<8x32xf32>
    %226 = arith.mulf %204, %225 : vector<8x32xf32>
    %227 = arith.addf %222, %226 : vector<8x32xf32>
    %c0_67 = arith.constant 0 : index
    %c0_68 = arith.constant 0 : index
    %c96 = arith.constant 96 : index
    %228 = vector.load %arg5[%c0_67, %c0_68, %c96] : memref<1x8x256xf32, #tpu.memory_space<vmem>>, vector<1x8x32xf32>
    %229 = vector.shape_cast %228 : vector<1x8x32xf32> to vector<8x32xf32>
    %230 = vector.shape_cast %219 : vector<8x32xf32> to vector<1x8x32xf32>
    tpu.vector_store %arg5[%c0_67, %c0_68, %c96], %230 {strides = array<i32>} : memref<1x8x256xf32, #tpu.memory_space<vmem>>, vector<1x8x32xf32>,
    %c4 = arith.constant 4 : index
    %c0_69 = arith.constant 0 : index
    %c0_70 = arith.constant 0 : index
    %231 = vector.load %arg1[%c4, %c0_69, %c0_70] : memref<8x8x16xf32, #tpu.memory_space<vmem>>, vector<1x8x16xf32>
    %232 = vector.shape_cast %231 : vector<1x8x16xf32> to vector<8x16xf32>
    %233 = tpu.concatenate %232, %219 in 1 : vector<8x16xf32>, vector<8x32xf32> -> vector<8x48xf32>
    %cst_71 = arith.constant dense<0.000000e+00> : vector<8x192xf32>
    %234 = tpu.matmul %233, %3, %cst_71 {dimension_numbers = #tpu.dot_dimension_numbers<[1], [0], [0], [1], [0, 0, 1, 1], [], []>} : vector<8x48xf32>, vector<48x192xf32>, vector<8x192xf32> -> vector<8x192xf32>
    %235 = arith.addf %234, %4 : vector<8x192xf32>
    %236 = vector.extract_strided_slice %235 {offsets = [0, 0], sizes = [8, 64], strides = [1, 1]} : vector<8x192xf32> to vector<8x64xf32>
    %237 = math.tanh %236 : vector<8x64xf32>
    %238 = vector.extract_strided_slice %235 {offsets = [0, 64], sizes = [8, 96], strides = [1, 1]} : vector<8x192xf32> to vector<8x96xf32>
    %239 = arith.negf %238 : vector<8x96xf32>
    %240 = math.exp %239 : vector<8x96xf32>
    %cst_72 = arith.constant 1.000000e+00 : f32
    %241 = vector.broadcast %cst_72 : f32 to vector<8x96xf32>
    %242 = arith.addf %241, %240 : vector<8x96xf32>
    %243 = arith.divf %241, %242 : vector<8x96xf32>
    %244 = vector.extract_strided_slice %235 {offsets = [0, 160], sizes = [8, 32], strides = [1, 1]} : vector<8x192xf32> to vector<8x32xf32>
    %245 = vector.extract_strided_slice %237 {offsets = [0, 0], sizes = [8, 32], strides = [1, 1]} : vector<8x64xf32> to vector<8x32xf32>
    %cst_73 = arith.constant 1.000000e+00 : f32
    %246 = vector.broadcast %cst_73 : f32 to vector<8x32xf32>
    %247 = arith.addf %246, %245 : vector<8x32xf32>
    %248 = vector.extract_strided_slice %237 {offsets = [0, 32], sizes = [8, 32], strides = [1, 1]} : vector<8x64xf32> to vector<8x32xf32>
    %cst_74 = arith.constant 1.000000e+00 : f32
    %249 = vector.broadcast %cst_74 : f32 to vector<8x32xf32>
    %250 = arith.addf %249, %248 : vector<8x32xf32>
    %cst_75 = arith.constant 1.500000e+00 : f32
    %251 = vector.broadcast %cst_75 : f32 to vector<8x32xf32>
    %252 = arith.mulf %251, %250 : vector<8x32xf32>
    %253 = vector.extract_strided_slice %243 {offsets = [0, 0], sizes = [8, 32], strides = [1, 1]} : vector<8x96xf32> to vector<8x32xf32>
    %cst_76 = arith.constant 0.699999988 : f32
    %254 = vector.broadcast %cst_76 : f32 to vector<8x32xf32>
    %255 = arith.mulf %254, %253 : vector<8x32xf32>
    %cst_77 = arith.constant 3.000000e-01 : f32
    %256 = vector.broadcast %cst_77 : f32 to vector<8x32xf32>
    %257 = arith.addf %256, %255 : vector<8x32xf32>
    %258 = vector.extract_strided_slice %243 {offsets = [0, 32], sizes = [8, 32], strides = [1, 1]} : vector<8x96xf32> to vector<8x32xf32>
    %cst_78 = arith.constant 3.000000e-02 : f32
    %259 = vector.broadcast %cst_78 : f32 to vector<8x32xf32>
    %260 = arith.mulf %259, %258 : vector<8x32xf32>
    %261 = vector.extract_strided_slice %243 {offsets = [0, 64], sizes = [8, 32], strides = [1, 1]} : vector<8x96xf32> to vector<8x32xf32>
    %cst_79 = arith.constant 1.000000e+00 : f32
    %262 = vector.broadcast %cst_79 : f32 to vector<8x32xf32>
    %263 = arith.addf %262, %261 : vector<8x32xf32>
    %cst_80 = arith.constant 1.000000e+00 : f32
    %264 = vector.broadcast %cst_80 : f32 to vector<8x32xf32>
    %265 = arith.subf %264, %257 : vector<8x32xf32>
    %266 = arith.mulf %265, %219 : vector<8x32xf32>
    %267 = arith.mulf %252, %219 : vector<8x32xf32>
    %268 = arith.mulf %267, %219 : vector<8x32xf32>
    %269 = arith.addf %247, %268 : vector<8x32xf32>
    %270 = arith.subf %269, %227 : vector<8x32xf32>
    %271 = arith.mulf %270, %219 : vector<8x32xf32>
    %272 = arith.addf %244, %271 : vector<8x32xf32>
    %273 = math.tanh %272 : vector<8x32xf32>
    %274 = arith.mulf %257, %273 : vector<8x32xf32>
    %275 = arith.addf %266, %274 : vector<8x32xf32>
    %cst_81 = arith.constant 1.000000e+00 : f32
    %276 = vector.broadcast %cst_81 : f32 to vector<8x32xf32>
    %277 = arith.subf %276, %260 : vector<8x32xf32>
    %278 = arith.mulf %227, %277 : vector<8x32xf32>
    %279 = arith.mulf %263, %219 : vector<8x32xf32>
    %280 = arith.mulf %279, %279 : vector<8x32xf32>
    %281 = arith.mulf %280, %280 : vector<8x32xf32>
    %282 = arith.mulf %260, %281 : vector<8x32xf32>
    %283 = arith.addf %278, %282 : vector<8x32xf32>
    %c0_82 = arith.constant 0 : index
    %c0_83 = arith.constant 0 : index
    %c128 = arith.constant 128 : index
    %284 = vector.load %arg5[%c0_82, %c0_83, %c128] : memref<1x8x256xf32, #tpu.memory_space<vmem>>, vector<1x8x32xf32>
    %285 = vector.shape_cast %284 : vector<1x8x32xf32> to vector<8x32xf32>
    %286 = vector.shape_cast %275 : vector<8x32xf32> to vector<1x8x32xf32>
    tpu.vector_store %arg5[%c0_82, %c0_83, %c128], %286 {strides = array<i32>} : memref<1x8x256xf32, #tpu.memory_space<vmem>>, vector<1x8x32xf32>,
    %c5 = arith.constant 5 : index
    %c0_84 = arith.constant 0 : index
    %c0_85 = arith.constant 0 : index
    %287 = vector.load %arg1[%c5, %c0_84, %c0_85] : memref<8x8x16xf32, #tpu.memory_space<vmem>>, vector<1x8x16xf32>
    %288 = vector.shape_cast %287 : vector<1x8x16xf32> to vector<8x16xf32>
    %289 = tpu.concatenate %288, %275 in 1 : vector<8x16xf32>, vector<8x32xf32> -> vector<8x48xf32>
    %cst_86 = arith.constant dense<0.000000e+00> : vector<8x192xf32>
    %290 = tpu.matmul %289, %3, %cst_86 {dimension_numbers = #tpu.dot_dimension_numbers<[1], [0], [0], [1], [0, 0, 1, 1], [], []>} : vector<8x48xf32>, vector<48x192xf32>, vector<8x192xf32> -> vector<8x192xf32>
    %291 = arith.addf %290, %4 : vector<8x192xf32>
    %292 = vector.extract_strided_slice %291 {offsets = [0, 0], sizes = [8, 64], strides = [1, 1]} : vector<8x192xf32> to vector<8x64xf32>
    %293 = math.tanh %292 : vector<8x64xf32>
    %294 = vector.extract_strided_slice %291 {offsets = [0, 64], sizes = [8, 96], strides = [1, 1]} : vector<8x192xf32> to vector<8x96xf32>
    %295 = arith.negf %294 : vector<8x96xf32>
    %296 = math.exp %295 : vector<8x96xf32>
    %cst_87 = arith.constant 1.000000e+00 : f32
    %297 = vector.broadcast %cst_87 : f32 to vector<8x96xf32>
    %298 = arith.addf %297, %296 : vector<8x96xf32>
    %299 = arith.divf %297, %298 : vector<8x96xf32>
    %300 = vector.extract_strided_slice %291 {offsets = [0, 160], sizes = [8, 32], strides = [1, 1]} : vector<8x192xf32> to vector<8x32xf32>
    %301 = vector.extract_strided_slice %293 {offsets = [0, 0], sizes = [8, 32], strides = [1, 1]} : vector<8x64xf32> to vector<8x32xf32>
    %cst_88 = arith.constant 1.000000e+00 : f32
    %302 = vector.broadcast %cst_88 : f32 to vector<8x32xf32>
    %303 = arith.addf %302, %301 : vector<8x32xf32>
    %304 = vector.extract_strided_slice %293 {offsets = [0, 32], sizes = [8, 32], strides = [1, 1]} : vector<8x64xf32> to vector<8x32xf32>
    %cst_89 = arith.constant 1.000000e+00 : f32
    %305 = vector.broadcast %cst_89 : f32 to vector<8x32xf32>
    %306 = arith.addf %305, %304 : vector<8x32xf32>
    %cst_90 = arith.constant 1.500000e+00 : f32
    %307 = vector.broadcast %cst_90 : f32 to vector<8x32xf32>
    %308 = arith.mulf %307, %306 : vector<8x32xf32>
    %309 = vector.extract_strided_slice %299 {offsets = [0, 0], sizes = [8, 32], strides = [1, 1]} : vector<8x96xf32> to vector<8x32xf32>
    %cst_91 = arith.constant 0.699999988 : f32
    %310 = vector.broadcast %cst_91 : f32 to vector<8x32xf32>
    %311 = arith.mulf %310, %309 : vector<8x32xf32>
    %cst_92 = arith.constant 3.000000e-01 : f32
    %312 = vector.broadcast %cst_92 : f32 to vector<8x32xf32>
    %313 = arith.addf %312, %311 : vector<8x32xf32>
    %314 = vector.extract_strided_slice %299 {offsets = [0, 32], sizes = [8, 32], strides = [1, 1]} : vector<8x96xf32> to vector<8x32xf32>
    %cst_93 = arith.constant 3.000000e-02 : f32
    %315 = vector.broadcast %cst_93 : f32 to vector<8x32xf32>
    %316 = arith.mulf %315, %314 : vector<8x32xf32>
    %317 = vector.extract_strided_slice %299 {offsets = [0, 64], sizes = [8, 32], strides = [1, 1]} : vector<8x96xf32> to vector<8x32xf32>
    %cst_94 = arith.constant 1.000000e+00 : f32
    %318 = vector.broadcast %cst_94 : f32 to vector<8x32xf32>
    %319 = arith.addf %318, %317 : vector<8x32xf32>
    %cst_95 = arith.constant 1.000000e+00 : f32
    %320 = vector.broadcast %cst_95 : f32 to vector<8x32xf32>
    %321 = arith.subf %320, %313 : vector<8x32xf32>
    %322 = arith.mulf %321, %275 : vector<8x32xf32>
    %323 = arith.mulf %308, %275 : vector<8x32xf32>
    %324 = arith.mulf %323, %275 : vector<8x32xf32>
    %325 = arith.addf %303, %324 : vector<8x32xf32>
    %326 = arith.subf %325, %283 : vector<8x32xf32>
    %327 = arith.mulf %326, %275 : vector<8x32xf32>
    %328 = arith.addf %300, %327 : vector<8x32xf32>
    %329 = math.tanh %328 : vector<8x32xf32>
    %330 = arith.mulf %313, %329 : vector<8x32xf32>
    %331 = arith.addf %322, %330 : vector<8x32xf32>
    %cst_96 = arith.constant 1.000000e+00 : f32
    %332 = vector.broadcast %cst_96 : f32 to vector<8x32xf32>
    %333 = arith.subf %332, %316 : vector<8x32xf32>
    %334 = arith.mulf %283, %333 : vector<8x32xf32>
    %335 = arith.mulf %319, %275 : vector<8x32xf32>
    %336 = arith.mulf %335, %335 : vector<8x32xf32>
    %337 = arith.mulf %336, %336 : vector<8x32xf32>
    %338 = arith.mulf %316, %337 : vector<8x32xf32>
    %339 = arith.addf %334, %338 : vector<8x32xf32>
    %c0_97 = arith.constant 0 : index
    %c0_98 = arith.constant 0 : index
    %c160 = arith.constant 160 : index
    %340 = vector.load %arg5[%c0_97, %c0_98, %c160] : memref<1x8x256xf32, #tpu.memory_space<vmem>>, vector<1x8x32xf32>
    %341 = vector.shape_cast %340 : vector<1x8x32xf32> to vector<8x32xf32>
    %342 = vector.shape_cast %331 : vector<8x32xf32> to vector<1x8x32xf32>
    tpu.vector_store %arg5[%c0_97, %c0_98, %c160], %342 {strides = array<i32>} : memref<1x8x256xf32, #tpu.memory_space<vmem>>, vector<1x8x32xf32>,
    %c6 = arith.constant 6 : index
    %c0_99 = arith.constant 0 : index
    %c0_100 = arith.constant 0 : index
    %343 = vector.load %arg1[%c6, %c0_99, %c0_100] : memref<8x8x16xf32, #tpu.memory_space<vmem>>, vector<1x8x16xf32>
    %344 = vector.shape_cast %343 : vector<1x8x16xf32> to vector<8x16xf32>
    %345 = tpu.concatenate %344, %331 in 1 : vector<8x16xf32>, vector<8x32xf32> -> vector<8x48xf32>
    %cst_101 = arith.constant dense<0.000000e+00> : vector<8x192xf32>
    %346 = tpu.matmul %345, %3, %cst_101 {dimension_numbers = #tpu.dot_dimension_numbers<[1], [0], [0], [1], [0, 0, 1, 1], [], []>} : vector<8x48xf32>, vector<48x192xf32>, vector<8x192xf32> -> vector<8x192xf32>
    %347 = arith.addf %346, %4 : vector<8x192xf32>
    %348 = vector.extract_strided_slice %347 {offsets = [0, 0], sizes = [8, 64], strides = [1, 1]} : vector<8x192xf32> to vector<8x64xf32>
    %349 = math.tanh %348 : vector<8x64xf32>
    %350 = vector.extract_strided_slice %347 {offsets = [0, 64], sizes = [8, 96], strides = [1, 1]} : vector<8x192xf32> to vector<8x96xf32>
    %351 = arith.negf %350 : vector<8x96xf32>
    %352 = math.exp %351 : vector<8x96xf32>
    %cst_102 = arith.constant 1.000000e+00 : f32
    %353 = vector.broadcast %cst_102 : f32 to vector<8x96xf32>
    %354 = arith.addf %353, %352 : vector<8x96xf32>
    %355 = arith.divf %353, %354 : vector<8x96xf32>
    %356 = vector.extract_strided_slice %347 {offsets = [0, 160], sizes = [8, 32], strides = [1, 1]} : vector<8x192xf32> to vector<8x32xf32>
    %357 = vector.extract_strided_slice %349 {offsets = [0, 0], sizes = [8, 32], strides = [1, 1]} : vector<8x64xf32> to vector<8x32xf32>
    %cst_103 = arith.constant 1.000000e+00 : f32
    %358 = vector.broadcast %cst_103 : f32 to vector<8x32xf32>
    %359 = arith.addf %358, %357 : vector<8x32xf32>
    %360 = vector.extract_strided_slice %349 {offsets = [0, 32], sizes = [8, 32], strides = [1, 1]} : vector<8x64xf32> to vector<8x32xf32>
    %cst_104 = arith.constant 1.000000e+00 : f32
    %361 = vector.broadcast %cst_104 : f32 to vector<8x32xf32>
    %362 = arith.addf %361, %360 : vector<8x32xf32>
    %cst_105 = arith.constant 1.500000e+00 : f32
    %363 = vector.broadcast %cst_105 : f32 to vector<8x32xf32>
    %364 = arith.mulf %363, %362 : vector<8x32xf32>
    %365 = vector.extract_strided_slice %355 {offsets = [0, 0], sizes = [8, 32], strides = [1, 1]} : vector<8x96xf32> to vector<8x32xf32>
    %cst_106 = arith.constant 0.699999988 : f32
    %366 = vector.broadcast %cst_106 : f32 to vector<8x32xf32>
    %367 = arith.mulf %366, %365 : vector<8x32xf32>
    %cst_107 = arith.constant 3.000000e-01 : f32
    %368 = vector.broadcast %cst_107 : f32 to vector<8x32xf32>
    %369 = arith.addf %368, %367 : vector<8x32xf32>
    %370 = vector.extract_strided_slice %355 {offsets = [0, 32], sizes = [8, 32], strides = [1, 1]} : vector<8x96xf32> to vector<8x32xf32>
    %cst_108 = arith.constant 3.000000e-02 : f32
    %371 = vector.broadcast %cst_108 : f32 to vector<8x32xf32>
    %372 = arith.mulf %371, %370 : vector<8x32xf32>
    %373 = vector.extract_strided_slice %355 {offsets = [0, 64], sizes = [8, 32], strides = [1, 1]} : vector<8x96xf32> to vector<8x32xf32>
    %cst_109 = arith.constant 1.000000e+00 : f32
    %374 = vector.broadcast %cst_109 : f32 to vector<8x32xf32>
    %375 = arith.addf %374, %373 : vector<8x32xf32>
    %cst_110 = arith.constant 1.000000e+00 : f32
    %376 = vector.broadcast %cst_110 : f32 to vector<8x32xf32>
    %377 = arith.subf %376, %369 : vector<8x32xf32>
    %378 = arith.mulf %377, %331 : vector<8x32xf32>
    %379 = arith.mulf %364, %331 : vector<8x32xf32>
    %380 = arith.mulf %379, %331 : vector<8x32xf32>
    %381 = arith.addf %359, %380 : vector<8x32xf32>
    %382 = arith.subf %381, %339 : vector<8x32xf32>
    %383 = arith.mulf %382, %331 : vector<8x32xf32>
    %384 = arith.addf %356, %383 : vector<8x32xf32>
    %385 = math.tanh %384 : vector<8x32xf32>
    %386 = arith.mulf %369, %385 : vector<8x32xf32>
    %387 = arith.addf %378, %386 : vector<8x32xf32>
    %cst_111 = arith.constant 1.000000e+00 : f32
    %388 = vector.broadcast %cst_111 : f32 to vector<8x32xf32>
    %389 = arith.subf %388, %372 : vector<8x32xf32>
    %390 = arith.mulf %339, %389 : vector<8x32xf32>
    %391 = arith.mulf %375, %331 : vector<8x32xf32>
    %392 = arith.mulf %391, %391 : vector<8x32xf32>
    %393 = arith.mulf %392, %392 : vector<8x32xf32>
    %394 = arith.mulf %372, %393 : vector<8x32xf32>
    %395 = arith.addf %390, %394 : vector<8x32xf32>
    %c0_112 = arith.constant 0 : index
    %c0_113 = arith.constant 0 : index
    %c192 = arith.constant 192 : index
    %396 = vector.load %arg5[%c0_112, %c0_113, %c192] : memref<1x8x256xf32, #tpu.memory_space<vmem>>, vector<1x8x32xf32>
    %397 = vector.shape_cast %396 : vector<1x8x32xf32> to vector<8x32xf32>
    %398 = vector.shape_cast %387 : vector<8x32xf32> to vector<1x8x32xf32>
    tpu.vector_store %arg5[%c0_112, %c0_113, %c192], %398 {strides = array<i32>} : memref<1x8x256xf32, #tpu.memory_space<vmem>>, vector<1x8x32xf32>,
    %c7 = arith.constant 7 : index
    %c0_114 = arith.constant 0 : index
    %c0_115 = arith.constant 0 : index
    %399 = vector.load %arg1[%c7, %c0_114, %c0_115] : memref<8x8x16xf32, #tpu.memory_space<vmem>>, vector<1x8x16xf32>
    %400 = vector.shape_cast %399 : vector<1x8x16xf32> to vector<8x16xf32>
    %401 = tpu.concatenate %400, %387 in 1 : vector<8x16xf32>, vector<8x32xf32> -> vector<8x48xf32>
    %cst_116 = arith.constant dense<0.000000e+00> : vector<8x192xf32>
    %402 = tpu.matmul %401, %3, %cst_116 {dimension_numbers = #tpu.dot_dimension_numbers<[1], [0], [0], [1], [0, 0, 1, 1], [], []>} : vector<8x48xf32>, vector<48x192xf32>, vector<8x192xf32> -> vector<8x192xf32>
    %403 = arith.addf %402, %4 : vector<8x192xf32>
    %404 = vector.extract_strided_slice %403 {offsets = [0, 0], sizes = [8, 64], strides = [1, 1]} : vector<8x192xf32> to vector<8x64xf32>
    %405 = math.tanh %404 : vector<8x64xf32>
    %406 = vector.extract_strided_slice %403 {offsets = [0, 64], sizes = [8, 96], strides = [1, 1]} : vector<8x192xf32> to vector<8x96xf32>
    %407 = arith.negf %406 : vector<8x96xf32>
    %408 = math.exp %407 : vector<8x96xf32>
    %cst_117 = arith.constant 1.000000e+00 : f32
    %409 = vector.broadcast %cst_117 : f32 to vector<8x96xf32>
    %410 = arith.addf %409, %408 : vector<8x96xf32>
    %411 = arith.divf %409, %410 : vector<8x96xf32>
    %412 = vector.extract_strided_slice %403 {offsets = [0, 160], sizes = [8, 32], strides = [1, 1]} : vector<8x192xf32> to vector<8x32xf32>
    %413 = vector.extract_strided_slice %405 {offsets = [0, 0], sizes = [8, 32], strides = [1, 1]} : vector<8x64xf32> to vector<8x32xf32>
    %cst_118 = arith.constant 1.000000e+00 : f32
    %414 = vector.broadcast %cst_118 : f32 to vector<8x32xf32>
    %415 = arith.addf %414, %413 : vector<8x32xf32>
    %416 = vector.extract_strided_slice %405 {offsets = [0, 32], sizes = [8, 32], strides = [1, 1]} : vector<8x64xf32> to vector<8x32xf32>
    %cst_119 = arith.constant 1.000000e+00 : f32
    %417 = vector.broadcast %cst_119 : f32 to vector<8x32xf32>
    %418 = arith.addf %417, %416 : vector<8x32xf32>
    %cst_120 = arith.constant 1.500000e+00 : f32
    %419 = vector.broadcast %cst_120 : f32 to vector<8x32xf32>
    %420 = arith.mulf %419, %418 : vector<8x32xf32>
    %421 = vector.extract_strided_slice %411 {offsets = [0, 0], sizes = [8, 32], strides = [1, 1]} : vector<8x96xf32> to vector<8x32xf32>
    %cst_121 = arith.constant 0.699999988 : f32
    %422 = vector.broadcast %cst_121 : f32 to vector<8x32xf32>
    %423 = arith.mulf %422, %421 : vector<8x32xf32>
    %cst_122 = arith.constant 3.000000e-01 : f32
    %424 = vector.broadcast %cst_122 : f32 to vector<8x32xf32>
    %425 = arith.addf %424, %423 : vector<8x32xf32>
    %426 = vector.extract_strided_slice %411 {offsets = [0, 32], sizes = [8, 32], strides = [1, 1]} : vector<8x96xf32> to vector<8x32xf32>
    %cst_123 = arith.constant 3.000000e-02 : f32
    %427 = vector.broadcast %cst_123 : f32 to vector<8x32xf32>
    %428 = arith.mulf %427, %426 : vector<8x32xf32>
    %429 = vector.extract_strided_slice %411 {offsets = [0, 64], sizes = [8, 32], strides = [1, 1]} : vector<8x96xf32> to vector<8x32xf32>
    %cst_124 = arith.constant 1.000000e+00 : f32
    %430 = vector.broadcast %cst_124 : f32 to vector<8x32xf32>
    %431 = arith.addf %430, %429 : vector<8x32xf32>
    %cst_125 = arith.constant 1.000000e+00 : f32
    %432 = vector.broadcast %cst_125 : f32 to vector<8x32xf32>
    %433 = arith.subf %432, %425 : vector<8x32xf32>
    %434 = arith.mulf %433, %387 : vector<8x32xf32>
    %435 = arith.mulf %420, %387 : vector<8x32xf32>
    %436 = arith.mulf %435, %387 : vector<8x32xf32>
    %437 = arith.addf %415, %436 : vector<8x32xf32>
    %438 = arith.subf %437, %395 : vector<8x32xf32>
    %439 = arith.mulf %438, %387 : vector<8x32xf32>
    %440 = arith.addf %412, %439 : vector<8x32xf32>
    %441 = math.tanh %440 : vector<8x32xf32>
    %442 = arith.mulf %425, %441 : vector<8x32xf32>
    %443 = arith.addf %434, %442 : vector<8x32xf32>
    %cst_126 = arith.constant 1.000000e+00 : f32
    %444 = vector.broadcast %cst_126 : f32 to vector<8x32xf32>
    %445 = arith.subf %444, %428 : vector<8x32xf32>
    %446 = arith.mulf %395, %445 : vector<8x32xf32>
    %447 = arith.mulf %431, %387 : vector<8x32xf32>
    %448 = arith.mulf %447, %447 : vector<8x32xf32>
    %449 = arith.mulf %448, %448 : vector<8x32xf32>
    %450 = arith.mulf %428, %449 : vector<8x32xf32>
    %451 = arith.addf %446, %450 : vector<8x32xf32>
    %c0_127 = arith.constant 0 : index
    %c0_128 = arith.constant 0 : index
    %c224 = arith.constant 224 : index
    %452 = vector.load %arg5[%c0_127, %c0_128, %c224] : memref<1x8x256xf32, #tpu.memory_space<vmem>>, vector<1x8x32xf32>
    %453 = vector.shape_cast %452 : vector<1x8x32xf32> to vector<8x32xf32>
    %454 = vector.shape_cast %443 : vector<8x32xf32> to vector<1x8x32xf32>
    tpu.vector_store %arg5[%c0_127, %c0_128, %c224], %454 {strides = array<i32>} : memref<1x8x256xf32, #tpu.memory_space<vmem>>, vector<1x8x32xf32>,
    %c0_129 = arith.constant 0 : index
    %c0_130 = arith.constant 0 : index
    %455 = vector.load %arg6[%c0_129, %c0_130] : memref<8x32xf32, #tpu.memory_space<vmem>>, vector<8x32xf32>
    tpu.vector_store %arg6[%c0_129, %c0_130], %443 {strides = array<i32>} : memref<8x32xf32, #tpu.memory_space<vmem>>, vector<8x32xf32>,
    %c0_131 = arith.constant 0 : index
    %c0_132 = arith.constant 0 : index
    %456 = vector.load %arg7[%c0_131, %c0_132] : memref<8x32xf32, #tpu.memory_space<vmem>>, vector<8x32xf32>
    tpu.vector_store %arg7[%c0_131, %c0_132], %451 {strides = array<i32>} : memref<8x32xf32, #tpu.memory_space<vmem>>, vector<8x32xf32>,
    return
  }
  func.func @transform_0(%arg0: i32) -> (i32, i32, i32) {
    %c0_i32 = arith.constant 0 : i32
    %c0_i32_0 = arith.constant 0 : i32
    %c0_i32_1 = arith.constant 0 : i32
    return %arg0, %c0_i32, %c0_i32_0 : i32, i32, i32
  }
  func.func @transform_1(%arg0: i32) -> (i32, i32) {
    %c0_i32 = arith.constant 0 : i32
    %c0_i32_0 = arith.constant 0 : i32
    %c0_i32_1 = arith.constant 0 : i32
    return %c0_i32, %c0_i32_0 : i32, i32
  }
  func.func @transform_2(%arg0: i32) -> (i32, i32) {
    %c0_i32 = arith.constant 0 : i32
    %c0_i32_0 = arith.constant 0 : i32
    %c0_i32_1 = arith.constant 0 : i32
    return %c0_i32, %c0_i32_0 : i32, i32
  }
  func.func @transform_3(%arg0: i32) -> (i32, i32, i32) {
    %c0_i32 = arith.constant 0 : i32
    %c0_i32_0 = arith.constant 0 : i32
    %c0_i32_1 = arith.constant 0 : i32
    %c0_i32_2 = arith.constant 0 : i32
    return %c0_i32, %c0_i32_0, %c0_i32_1 : i32, i32, i32
  }
  func.func @transform_4(%arg0: i32) -> (i32, i32, i32) {
    %c0_i32 = arith.constant 0 : i32
    %c0_i32_0 = arith.constant 0 : i32
    %c0_i32_1 = arith.constant 0 : i32
    return %arg0, %c0_i32, %c0_i32_0 : i32, i32, i32
  }
}

</mosaic_0001>

<llo_original>
// kernel: tpu_custom_call.1
$region0: #{tpu_custom_call.1}
  #allocation0 [shape = 'u32[]', space=smem, size = 0x4, offset = 0x4, fixed_abs, tag = 'smem constant byte address 0x4 - core index']
  #allocation1 [shape = 'u32[144,128]{1,0:T(1,128)}', space=vmem, size = 0x12000, scoped, tag = 'internal scratch']
  #allocation2 [shape = 'f32[8,32]{1,0:T(8,128)}', space=vmem, size = 0x1000, scoped, tag = 'scratch operand']
  #allocation3 [shape = 'f32[8,32]{1,0:T(8,128)}', space=vmem, size = 0x1000, scoped, tag = 'scratch operand']
  %s0 = inlined_call_operand.hbm [shape: f32[8,8,16], index: 0, kind: input, shape index: {}]
  %s1 = inlined_call_operand.hbm [shape: f32[48,192], index: 1, kind: input, shape index: {}]
  %s2 = inlined_call_operand.hbm [shape: f32[8,192], index: 2, kind: input, shape index: {}]
  %s3 = inlined_call_operand.hbm [shape: f32[2,8,32], index: 3, kind: input, shape index: {}]
  %s4 = inlined_call_operand.hbm [shape: f32[1,8,256], index: 4, kind: output, shape index: {}]
  %s5 = sld [smem:[#allocation0]]
  $region46: #{tpu_custom_call.1} parent=0
    _
  %s7 = ssub.s32 1, %s5
  %s8 = scalar_select 0, %s7, %s5
  $region1: #{tpu_custom_call.1} parent=0
    #allocation4 [shape = 'u8[32768]{0}', space=vmem, size = 0x8000, scoped, tag = 'input window, operand 0, single buffered']
    #allocation5 [shape = 's32[1]{0}', space=sflag, size = 0x4, scoped, tag = 'scoped memory for tpu_custom_call.1']
    #allocation6 [shape = 's32[1]{0}', space=sflag, size = 0x4, scoped, tag = 'scoped memory for tpu_custom_call.1']
    #allocation7 [shape = 'u8[49152]{0}', space=vmem, size = 0xc000, scoped, tag = 'input window, operand 1, single buffered']
    #allocation8 [shape = 's32[1]{0}', space=sflag, size = 0x4, scoped, tag = 'scoped memory for tpu_custom_call.1']
    #allocation9 [shape = 'u8[8192]{0}', space=vmem, size = 0x2000, scoped, tag = 'input window, operand 2, single buffered']
    #allocation10 [shape = 'u8[8192]{0}', space=vmem, size = 0x2000, scoped, tag = 'input window, operand 3, single buffered']
    #allocation11 [shape = 's32[1]{0}', space=sflag, size = 0x4, scoped, tag = 'scoped memory for tpu_custom_call.1']
    #allocation12 [shape = 'u8[8192]{0}', space=vmem, size = 0x2000, scoped, tag = 'output window, operand 0, single buffered']
    %9 = vsyncpa [#allocation5], 0
    %10 = vsyncpa [#allocation8], 0
    %11 = vsyncpa [#allocation11], 0
    %12 = vsyncpa [#allocation6], 0
    // Predicated region
    $region2: #{tpu_custom_call.1} parent=1 // pred_check
      _
    $region3: #{tpu_custom_call.1} parent=1 // pred_check_branch
      %14 = sbr.rel (0) target = $region5
    $region4: #{tpu_custom_call.1} parent=1 // pred_region
      %s16 = ssub.s32 1024, 1024
      %17 = vsyncadd [#allocation5], %s16
      %s18 = sshll.u32 [#allocation4], 4
      %s19 = int_to_ptr.vmem [resolvable:$true] %s18
      %24 = dma.hbm_to_vmem [thread:$0]  %s0, 1024, %s19, [#allocation5], 128, 128, 8
    $region5: #{tpu_custom_call.1} parent=1 // pred_fallthru
      _
    // Predicated region
    $region6: #{tpu_custom_call.1} parent=1 // pred_check
      _
    $region7: #{tpu_custom_call.1} parent=1 // pred_check_branch
      %26 = sbr.rel (0) target = $region9
    $region8: #{tpu_custom_call.1} parent=1 // pred_region
      %s28 = ssub.s32 1536, 1536
      %29 = vsyncadd [#allocation8], %s28
      %s30 = sshll.u32 [#allocation7], 4
      %s31 = int_to_ptr.vmem [resolvable:$true] %s30
      %36 = dma.hbm_to_vmem [thread:$0]  %s1, 1536, %s31, [#allocation8], 256, 256, 16
    $region9: #{tpu_custom_call.1} parent=1 // pred_fallthru
      _
    // Predicated region
    $region10: #{tpu_custom_call.1} parent=1 // pred_check
      _
    $region11: #{tpu_custom_call.1} parent=1 // pred_check_branch
      %38 = sbr.rel (0) target = $region13
    $region12: #{tpu_custom_call.1} parent=1 // pred_region
      %s40 = ssub.s32 256, 256
      %41 = vsyncadd [#allocation8], %s40
      %s43 = sshll.u32 [#allocation9], 4
      %s44 = int_to_ptr.vmem [resolvable:$true] %s43
      %46 = dma.hbm_to_vmem [thread:$0]  %s2, 256, %s44, [#allocation8]
    $region13: #{tpu_custom_call.1} parent=1 // pred_fallthru
      _
    // Predicated region
    $region14: #{tpu_custom_call.1} parent=1 // pred_check
      _
    $region15: #{tpu_custom_call.1} parent=1 // pred_check_branch
      %48 = sbr.rel (0) target = $region17
    $region16: #{tpu_custom_call.1} parent=1 // pred_region
      %s50 = ssub.s32 256, 256
      %51 = vsyncadd [#allocation11], %s50
      %s52 = sshll.u32 [#allocation10], 4
      %s53 = int_to_ptr.vmem [resolvable:$true] %s52
      %58 = dma.hbm_to_vmem [thread:$0]  %s3, 256, %s53, [#allocation11], 128, 128, 8
    $region17: #{tpu_custom_call.1} parent=1 // pred_fallthru
      _
    // Predicated region
    $region18: #{tpu_custom_call.1} parent=1 // pred_check
      _
    $region19: #{tpu_custom_call.1} parent=1 // pred_check_branch
      %60 = sbr.rel (0) target = $region21
    $region20: #{tpu_custom_call.1} parent=1 // pred_region
      %61 = dma.done [#allocation5], 1024
    $region21: #{tpu_custom_call.1} parent=1 // pred_fallthru
      _
    // Predicated region
    $region22: #{tpu_custom_call.1} parent=1 // pred_check
      _
    $region23: #{tpu_custom_call.1} parent=1 // pred_check_branch
      %63 = sbr.rel (0) target = $region25
    $region24: #{tpu_custom_call.1} parent=1 // pred_region
      %64 = dma.done [#allocation8], 1536
    $region25: #{tpu_custom_call.1} parent=1 // pred_fallthru
      _
    // Predicated region
    $region26: #{tpu_custom_call.1} parent=1 // pred_check
      _
    $region27: #{tpu_custom_call.1} parent=1 // pred_check_branch
      %66 = sbr.rel (0) target = $region29
    $region28: #{tpu_custom_call.1} parent=1 // pred_region
      %67 = dma.done [#allocation8], 256
    $region29: #{tpu_custom_call.1} parent=1 // pred_fallthru
      _
    // Predicated region
    $region30: #{tpu_custom_call.1} parent=1 // pred_check
      _
    $region31: #{tpu_custom_call.1} parent=1 // pred_check_branch
      %69 = sbr.rel (0) target = $region33
    $region32: #{tpu_custom_call.1} parent=1 // pred_region
      %70 = dma.done [#allocation11], 256
    $region33: #{tpu_custom_call.1} parent=1 // pred_fallthru
      _
    %p71 = scmp.eq.s32.totalorder 0, 0
    // Predicated region
    $region34: #{tpu_custom_call.1} parent=1 // pred_check
      %p72 = pneg %p71
    $region35: #{tpu_custom_call.1} parent=1 // pred_check_branch
      %74 = sbr.rel (%p72) target = $region37
    $region36: #{tpu_custom_call.1} parent=1 // pred_region
      %v75 = vld [vmem:[#allocation10] sm:$0xff]
      %vm76 = vcmask 261120
      %77 = vst.msk [vmem:[#allocation2] sm:$0xff] %vm76, %v75
      %s78 = scalar_lea.vmem [#allocation10], 8
      %v79 = vld [vmem:[%s78] sm:$0xff]
      %80 = vst.msk [vmem:[#allocation3] sm:$0xff] %vm76, %v79
    $region37: #{tpu_custom_call.1} parent=1 // pred_fallthru
      _
    %v81 = vld [vmem:[#allocation7] sm:$0xff]
    %v82 = vld [vmem:[#allocation7 + $0x8] sm:$0xff]
    %v83 = vld [vmem:[#allocation7 + $0x10] sm:$0xff]
    %v84 = vld [vmem:[#allocation7 + $0x18] sm:$0xff]
    %v85 = vld [vmem:[#allocation7 + $0x20] sm:$0xff]
    %v86 = vld [vmem:[#allocation7 + $0x28] sm:$0xff]
    %v87 = vld [vmem:[#allocation7 + $0x30] sm:$0xff]
    %v88 = vld [vmem:[#allocation7 + $0x38] sm:$0xff]
    %v89 = vld [vmem:[#allocation7 + $0x40] sm:$0xff]
    %v90 = vld [vmem:[#allocation7 + $0x48] sm:$0xff]
    %v91 = vld [vmem:[#allocation7 + $0x50] sm:$0xff]
    %v92 = vld [vmem:[#allocation7 + $0x58] sm:$0xff]
    %v93 = vld [vmem:[#allocation9] sm:$0xff]
    %v94 = vld [vmem:[#allocation9 + $0x8] sm:$0xff]
    %v95 = vld [vmem:[#allocation2] sm:$0xff]
    %v96 = vld [vmem:[#allocation3] sm:$0xff]
    %v97 = vld [vmem:[#allocation4] sm:$0xff]
    %99 = vrot.lane.b32.xlu0 %v95, 16
    %v100 = vpop.permute.xlu0 %99
    %vm102 = vcmask 130048
    %v103 = vsel %vm102, %v97, %v100
    %vm104 = vcmask 392192
    %v106 = vsel %vm104, %v103, 0
    %108 = vmatprep.subr.mxu0 %v82
    %109 = vmatpush1.msra.mxu0 %v81
    %110 = vmatprep.subr.mxu0 %v84
    %111 = vmatpush1.msra.mxu0 %v83
    %112 = vmatprep.subr.mxu0 %v86
    %113 = vmatpush1.msra.mxu0 %v85
    %114 = vmatprep.subr.mxu0 %v88
    %115 = vmatpush1.msra.mxu0 %v87
    %116 = vmatprep.subr.mxu0 %v90
    %117 = vmatpush1.msra.mxu0 %v89
    %118 = vmatprep.subr.mxu0 %v92
    %119 = vmatpush1.msra.mxu0 %v91
    %120 = vmatprep.subr.mxu0 0.0
    %121 = vmatpush1.msra.mxu0 0.0
    %122 = vmatprep.subr.mxu0 0.0
    %123 = vmatpush1.msra.mxu0 0.0
    %124 = vmatprep.subr.mxu0 0.0
    %125 = vmatpush1.msra.mxu0 0.0
    %126 = vmatprep.subr.mxu0 0.0
    %127 = vmatpush1.msra.mxu0 0.0
    %128 = vmatprep.subr.mxu0 0.0
    %129 = vmatpush1.msra.mxu0 0.0
    %130 = vmatprep.subr.mxu0 0.0
    %131 = vmatpush1.msra.mxu0 0.0
    %132 = vmatprep.subr.mxu0 0.0
    %133 = vmatpush1.msra.mxu0 0.0
    %134 = vmatprep.subr.mxu0 0.0
    %135 = vmatpush1.msra.mxu0 0.0
    %136 = vmatprep.subr.mxu0 0.0
    %137 = vmatpush1.msra.mxu0 0.0
    %138 = vmatprep.subr.mxu0 0.0
    %139 = vmatpush1.msra.mxu0 0.0
    %140 = vmatprep.subr.mxu0 0.0
    %141 = vmatpush1.msra.mxu0 0.0
    %142 = vmatprep.subr.mxu0 0.0
    %143 = vmatpush1.msra.mxu0 0.0
    %144 = vmatprep.subr.mxu0 0.0
    %145 = vmatpush1.msra.mxu0 0.0
    %146 = vmatprep.subr.mxu0 0.0
    %147 = vmatpush1.msra.mxu0 0.0
    %148 = vmatprep.subr.mxu0 0.0
    %149 = vmatpush1.msra.mxu0 0.0
    %150 = vmatprep.subr.mxu0 0.0
    %151 = vmatpush1.msra.mxu0 0.0
    %152 = vmatprep.subr.mxu0 0.0
    %153 = vmatpush1.msra.mxu0 0.0
    %154 = vmatprep.subr.mxu0 0.0
    %155 = vmatpush1.msra.mxu0 0.0
    %156 = vmatprep.subr.mxu0 0.0
    %157 = vmatpush1.msra.mxu0 0.0
    %158 = vmatprep.subr.mxu0 0.0
    %159 = vmatpush1.msra.mxu0 0.0
    %160 = vmatprep.subr.mxu0 0.0
    %161 = vmatpush1.msra.mxu0 0.0
    %162 = vmatprep.subr.mxu0 0.0
    %163 = vmatpush1.msra.mxu0 0.0
    %164 = vmatprep.subr.mxu0 0.0
    %165 = vmatpush1.msra.mxu0 0.0
    %166 = vmatprep.subr.mxu0 0.0
    %167 = vmatpush1.msra.mxu0 0.0
    %168 = vmatprep.subr.mxu0 0.0
    %169 = vmatpush1.msra.mxu0 0.0
    %170 = vmatprep.subr.mxu0 0.0
    %171 = vmatpush1.msra.mxu0 0.0
    %172 = vmatprep.mubr.f32.mxu0 0.0
    %173 = vmatmul.mubr.f32.gmra.mrb[0].mxu0 %v106
    %v174 = vpop.f32.mrb[0].mxu0
    %v175 = vadd.f32 %v93, %v174
    %v176 = vpop.f32.mrb[0].mxu0
    %v177 = vadd.f32 %v94, %v176
    %178 = vdwg.mxu0
    %v179 = vtanh.pop %v175
    %v180 = vxor.u32 %v175, 2147483648
    %v181 = vxor.u32 %v177, 2147483648
    %v182 = vmul.f32 %v180, 1.442695
    %v183 = vpow.pop %v182
    %v184 = vmul.f32 %v181, 1.442695
    %v185 = vpow.pop %v184
    %v186 = vadd.f32 %v183, 1.0
    %v187 = vadd.f32 %v185, 1.0
    %v188 = vrcp.pop %v186
    %v189 = vmul.f32 1.0, %v188
    %v190 = vrcp.pop %v187
    %v191 = vmul.f32 1.0, %v190
    %v192 = vadd.f32 %v179, 1.0
    %v193 = vmul.f32 %v192, 1.5
    %v194 = vmul.f32 %v189, 0.7
    %v195 = vadd.f32 %v194, 0.3
    %v196 = vmul.f32 %v189, 0.03
    %v197 = vadd.f32 %v191, 1.0
    %v198 = vsub.f32 1.0, %v195
    %199 = vrot.lane.b32.xlu0 %v95, 64
    %v200 = vpop.permute.xlu0 %199
    %v202 = vmul.f32 %v198, %v200
    %203 = vrot.lane.b32.xlu0 %v95, 32
    %v204 = vpop.permute.xlu0 %203
    %v206 = vmul.f32 %v193, %v204
    %v207 = vmul.f32 %v206, %v204
    %209 = vrot.lane.b32.xlu0 %v207, 96
    %v210 = vpop.permute.xlu0 %209
    %v212 = vadd.f32 %v192, %v210
    %v213 = vsub.f32 %v212, %v96
    %v214 = vmul.f32 %v213, %v95
    %216 = vrot.lane.b32.xlu0 %v214, 32
    %v217 = vpop.permute.xlu0 %216
    %v219 = vadd.f32 %v177, %v217
    %v220 = vtanh.pop %v219
    %222 = vrot.lane.b32.xlu0 %v220, 32
    %v223 = vpop.permute.xlu0 %222
    %v225 = vmul.f32 %v195, %v223
    %v226 = vadd.f32 %v202, %v225
    %v227 = vsub.f32 1.0, %v196
    %229 = vrot.lane.b32.xlu0 %v227, 32
    %v230 = vpop.permute.xlu0 %229
    %v232 = vmul.f32 %v96, %v230
    %v233 = vmul.f32 %v197, %v95
    %v234 = vmul.f32 %v233, %v233
    %v235 = vmul.f32 %v234, %v234
    %237 = vrot.lane.b32.xlu0 %v235, 96
    %v238 = vpop.permute.xlu0 %237
    %v240 = vmul.f32 %v196, %v238
    %242 = vrot.lane.b32.xlu0 %v240, 32
    %v243 = vpop.permute.xlu0 %242
    %v245 = vadd.f32 %v232, %v243
    %247 = vrot.lane.b32.xlu0 %v226, 64
    %v248 = vpop.permute.xlu0 %247
    %vm250 = vcmask 261120
    %251 = vst.msk [vmem:[#allocation12] sm:$0xff] %vm250, %v248
    %s252 = scalar_lea.vmem [#allocation4], 8
    %v253 = vld [vmem:[%s252] sm:$0xff]
    %254 = vrot.lane.b32.xlu0 %v226, 80
    %v255 = vpop.permute.xlu0 %254
    %v257 = vsel %vm102, %v253, %v255
    %v259 = vsel %vm104, %v257, 0
    %261 = vmatprep.subr.mxu0 %v82
    %262 = vmatpush1.msra.mxu0 %v81
    %263 = vmatprep.subr.mxu0 %v84
    %264 = vmatpush1.msra.mxu0 %v83
    %265 = vmatprep.subr.mxu0 %v86
    %266 = vmatpush1.msra.mxu0 %v85
    %267 = vmatprep.subr.mxu0 %v88
    %268 = vmatpush1.msra.mxu0 %v87
    %269 = vmatprep.subr.mxu0 %v90
    %270 = vmatpush1.msra.mxu0 %v89
    %271 = vmatprep.subr.mxu0 %v92
    %272 = vmatpush1.msra.mxu0 %v91
    %273 = vmatprep.subr.mxu0 0.0
    %274 = vmatpush1.msra.mxu0 0.0
    %275 = vmatprep.subr.mxu0 0.0
    %276 = vmatpush1.msra.mxu0 0.0
    %277 = vmatprep.subr.mxu0 0.0
    %278 = vmatpush1.msra.mxu0 0.0
    %279 = vmatprep.subr.mxu0 0.0
    %280 = vmatpush1.msra.mxu0 0.0
    %281 = vmatprep.subr.mxu0 0.0
    %282 = vmatpush1.msra.mxu0 0.0
    %283 = vmatprep.subr.mxu0 0.0
    %284 = vmatpush1.msra.mxu0 0.0
    %285 = vmatprep.subr.mxu0 0.0
    %286 = vmatpush1.msra.mxu0 0.0
    %287 = vmatprep.subr.mxu0 0.0
    %288 = vmatpush1.msra.mxu0 0.0
    %289 = vmatprep.subr.mxu0 0.0
    %290 = vmatpush1.msra.mxu0 0.0
    %291 = vmatprep.subr.mxu0 0.0
    %292 = vmatpush1.msra.mxu0 0.0
    %293 = vmatprep.subr.mxu0 0.0
    %294 = vmatpush1.msra.mxu0 0.0
    %295 = vmatprep.subr.mxu0 0.0
    %296 = vmatpush1.msra.mxu0 0.0
    %297 = vmatprep.subr.mxu0 0.0
    %298 = vmatpush1.msra.mxu0 0.0
    %299 = vmatprep.subr.mxu0 0.0
    %300 = vmatpush1.msra.mxu0 0.0
    %301 = vmatprep.subr.mxu0 0.0
    %302 = vmatpush1.msra.mxu0 0.0
    %303 = vmatprep.subr.mxu0 0.0
    %304 = vmatpush1.msra.mxu0 0.0
    %305 = vmatprep.subr.mxu0 0.0
    %306 = vmatpush1.msra.mxu0 0.0
    %307 = vmatprep.subr.mxu0 0.0
    %308 = vmatpush1.msra.mxu0 0.0
    %309 = vmatprep.subr.mxu0 0.0
    %310 = vmatpush1.msra.mxu0 0.0
    %311 = vmatprep.subr.mxu0 0.0
    %312 = vmatpush1.msra.mxu0 0.0
    %313 = vmatprep.subr.mxu0 0.0
    %314 = vmatpush1.msra.mxu0 0.0
    %315 = vmatprep.subr.mxu0 0.0
    %316 = vmatpush1.msra.mxu0 0.0
    %317 = vmatprep.subr.mxu0 0.0
    %318 = vmatpush1.msra.mxu0 0.0
    %319 = vmatprep.subr.mxu0 0.0
    %320 = vmatpush1.msra.mxu0 0.0
    %321 = vmatprep.subr.mxu0 0.0
    %322 = vmatpush1.msra.mxu0 0.0
    %323 = vmatprep.subr.mxu0 0.0
    %324 = vmatpush1.msra.mxu0 0.0
    %325 = vmatprep.mubr.f32.mxu0 0.0
    %326 = vmatmul.mubr.f32.gmra.mrb[0].mxu0 %v259
    %v327 = vpop.f32.mrb[0].mxu0
    %v328 = vadd.f32 %v93, %v327
    %v329 = vpop.f32.mrb[0].mxu0
    %v330 = vadd.f32 %v94, %v329
    %331 = vdwg.mxu0
    %v332 = vtanh.pop %v328
    %v333 = vxor.u32 %v328, 2147483648
    %v334 = vxor.u32 %v330, 2147483648
    %v335 = vmul.f32 %v333, 1.442695
    %v336 = vpow.pop %v335
    %v337 = vmul.f32 %v334, 1.442695
    %v338 = vpow.pop %v337
    %v339 = vadd.f32 %v336, 1.0
    %v340 = vadd.f32 %v338, 1.0
    %v341 = vrcp.pop %v339
    %v342 = vmul.f32 1.0, %v341
    %v343 = vrcp.pop %v340
    %v344 = vmul.f32 1.0, %v343
    %v345 = vadd.f32 %v332, 1.0
    %v346 = vmul.f32 %v345, 1.5
    %v347 = vmul.f32 %v342, 0.7
    %v348 = vadd.f32 %v347, 0.3
    %v349 = vmul.f32 %v342, 0.03
    %v350 = vadd.f32 %v344, 1.0
    %v351 = vsub.f32 1.0, %v348
    %v352 = vmul.f32 %v351, %v226
    %353 = vrot.lane.b32.xlu0 %v226, 96
    %v354 = vpop.permute.xlu0 %353
    %v356 = vmul.f32 %v346, %v354
    %v357 = vmul.f32 %v356, %v354
    %359 = vrot.lane.b32.xlu0 %v357, 96
    %v360 = vpop.permute.xlu0 %359
    %v362 = vadd.f32 %v345, %v360
    %v363 = vsub.f32 %v362, %v245
    %v364 = vmul.f32 %v363, %v248
    %366 = vrot.lane.b32.xlu0 %v364, 32
    %v367 = vpop.permute.xlu0 %366
    %v369 = vadd.f32 %v330, %v367
    %v370 = vtanh.pop %v369
    %372 = vrot.lane.b32.xlu0 %v370, 32
    %v373 = vpop.permute.xlu0 %372
    %v375 = vmul.f32 %v348, %v373
    %v376 = vadd.f32 %v352, %v375
    %v377 = vsub.f32 1.0, %v349
    %379 = vrot.lane.b32.xlu0 %v377, 32
    %v380 = vpop.permute.xlu0 %379
    %v382 = vmul.f32 %v245, %v380
    %v383 = vmul.f32 %v350, %v248
    %v384 = vmul.f32 %v383, %v383
    %v385 = vmul.f32 %v384, %v384
    %387 = vrot.lane.b32.xlu0 %v385, 96
    %v388 = vpop.permute.xlu0 %387
    %v390 = vmul.f32 %v349, %v388
    %392 = vrot.lane.b32.xlu0 %v390, 32
    %v393 = vpop.permute.xlu0 %392
    %v395 = vadd.f32 %v382, %v393
    %397 = vrot.lane.b32.xlu0 %v376, 96
    %v398 = vpop.permute.xlu0 %397
    %vm400 = vcmask 523520
    %401 = vst.msk [vmem:[#allocation12] sm:$0xff] %vm400, %v398
    %s402 = scalar_lea.vmem [#allocation4], 16
    %v403 = vld [vmem:[%s402] sm:$0xff]
    %404 = vrot.lane.b32.xlu0 %v376, 80
    %v405 = vpop.permute.xlu0 %404
    %v407 = vsel %vm102, %v403, %v405
    %v409 = vsel %vm104, %v407, 0
    %411 = vmatprep.subr.mxu0 %v82
    %412 = vmatpush1.msra.mxu0 %v81
    %413 = vmatprep.subr.mxu0 %v84
    %414 = vmatpush1.msra.mxu0 %v83
    %415 = vmatprep.subr.mxu0 %v86
    %416 = vmatpush1.msra.mxu0 %v85
    %417 = vmatprep.subr.mxu0 %v88
    %418 = vmatpush1.msra.mxu0 %v87
    %419 = vmatprep.subr.mxu0 %v90
    %420 = vmatpush1.msra.mxu0 %v89
    %421 = vmatprep.subr.mxu0 %v92
    %422 = vmatpush1.msra.mxu0 %v91
    %423 = vmatprep.subr.mxu0 0.0
    %424 = vmatpush1.msra.mxu0 0.0
    %425 = vmatprep.subr.mxu0 0.0
    %426 = vmatpush1.msra.mxu0 0.0
    %427 = vmatprep.subr.mxu0 0.0
    %428 = vmatpush1.msra.mxu0 0.0
    %429 = vmatprep.subr.mxu0 0.0
    %430 = vmatpush1.msra.mxu0 0.0
    %431 = vmatprep.subr.mxu0 0.0
    %432 = vmatpush1.msra.mxu0 0.0
    %433 = vmatprep.subr.mxu0 0.0
    %434 = vmatpush1.msra.mxu0 0.0
    %435 = vmatprep.subr.mxu0 0.0
    %436 = vmatpush1.msra.mxu0 0.0
    %437 = vmatprep.subr.mxu0 0.0
    %438 = vmatpush1.msra.mxu0 0.0
    %439 = vmatprep.subr.mxu0 0.0
    %440 = vmatpush1.msra.mxu0 0.0
    %441 = vmatprep.subr.mxu0 0.0
    %442 = vmatpush1.msra.mxu0 0.0
    %443 = vmatprep.subr.mxu0 0.0
    %444 = vmatpush1.msra.mxu0 0.0
    %445 = vmatprep.subr.mxu0 0.0
    %446 = vmatpush1.msra.mxu0 0.0
    %447 = vmatprep.subr.mxu0 0.0
    %448 = vmatpush1.msra.mxu0 0.0
    %449 = vmatprep.subr.mxu0 0.0
    %450 = vmatpush1.msra.mxu0 0.0
    %451 = vmatprep.subr.mxu0 0.0
    %452 = vmatpush1.msra.mxu0 0.0
    %453 = vmatprep.subr.mxu0 0.0
    %454 = vmatpush1.msra.mxu0 0.0
    %455 = vmatprep.subr.mxu0 0.0
    %456 = vmatpush1.msra.mxu0 0.0
    %457 = vmatprep.subr.mxu0 0.0
    %458 = vmatpush1.msra.mxu0 0.0
    %459 = vmatprep.subr.mxu0 0.0
    %460 = vmatpush1.msra.mxu0 0.0
    %461 = vmatprep.subr.mxu0 0.0
    %462 = vmatpush1.msra.mxu0 0.0
    %463 = vmatprep.subr.mxu0 0.0
    %464 = vmatpush1.msra.mxu0 0.0
    %465 = vmatprep.subr.mxu0 0.0
    %466 = vmatpush1.msra.mxu0 0.0
    %467 = vmatprep.subr.mxu0 0.0
    %468 = vmatpush1.msra.mxu0 0.0
    %469 = vmatprep.subr.mxu0 0.0
    %470 = vmatpush1.msra.mxu0 0.0
    %471 = vmatprep.subr.mxu0 0.0
    %472 = vmatpush1.msra.mxu0 0.0
    %473 = vmatprep.subr.mxu0 0.0
    %474 = vmatpush1.msra.mxu0 0.0
    %475 = vmatprep.mubr.f32.mxu0 0.0
    %476 = vmatmul.mubr.f32.gmra.mrb[0].mxu0 %v409
    %v477 = vpop.f32.mrb[0].mxu0
    %v478 = vadd.f32 %v93, %v477
    %v479 = vpop.f32.mrb[0].mxu0
    %v480 = vadd.f32 %v94, %v479
    %481 = vdwg.mxu0
    %v482 = vtanh.pop %v478
    %v483 = vxor.u32 %v478, 2147483648
    %v484 = vxor.u32 %v480, 2147483648
    %v485 = vmul.f32 %v483, 1.442695
    %v486 = vpow.pop %v485
    %v487 = vmul.f32 %v484, 1.442695
    %v488 = vpow.pop %v487
    %v489 = vadd.f32 %v486, 1.0
    %v490 = vadd.f32 %v488, 1.0
    %v491 = vrcp.pop %v489
    %v492 = vmul.f32 1.0, %v491
    %v493 = vrcp.pop %v490
    %v494 = vmul.f32 1.0, %v493
    %v495 = vadd.f32 %v482, 1.0
    %v496 = vmul.f32 %v495, 1.5
    %v497 = vmul.f32 %v492, 0.7
    %v498 = vadd.f32 %v497, 0.3
    %v499 = vmul.f32 %v492, 0.03
    %v500 = vadd.f32 %v494, 1.0
    %v501 = vsub.f32 1.0, %v498
    %v502 = vmul.f32 %v501, %v376
    %v503 = vmul.f32 %v496, %v398
    %v504 = vmul.f32 %v503, %v398
    %506 = vrot.lane.b32.xlu0 %v504, 96
    %v507 = vpop.permute.xlu0 %506
    %v509 = vadd.f32 %v495, %v507
    %v510 = vsub.f32 %v509, %v395
    %511 = vrot.lane.b32.xlu0 %v376, 64
    %v512 = vpop.permute.xlu0 %511
    %v514 = vmul.f32 %v510, %v512
    %516 = vrot.lane.b32.xlu0 %v514, 32
    %v517 = vpop.permute.xlu0 %516
    %v519 = vadd.f32 %v480, %v517
    %v520 = vtanh.pop %v519
    %522 = vrot.lane.b32.xlu0 %v520, 32
    %v523 = vpop.permute.xlu0 %522
    %v525 = vmul.f32 %v498, %v523
    %v526 = vadd.f32 %v502, %v525
    %v527 = vsub.f32 1.0, %v499
    %529 = vrot.lane.b32.xlu0 %v527, 32
    %v530 = vpop.permute.xlu0 %529
    %v532 = vmul.f32 %v395, %v530
    %v533 = vmul.f32 %v500, %v512
    %v534 = vmul.f32 %v533, %v533
    %v535 = vmul.f32 %v534, %v534
    %537 = vrot.lane.b32.xlu0 %v535, 96
    %v538 = vpop.permute.xlu0 %537
    %v540 = vmul.f32 %v499, %v538
    %542 = vrot.lane.b32.xlu0 %v540, 32
    %v543 = vpop.permute.xlu0 %542
    %v545 = vadd.f32 %v532, %v543
    %vm546 = vcmask 785920
    %547 = vst.msk [vmem:[#allocation12] sm:$0xff] %vm546, %v526
    %s548 = scalar_lea.vmem [#allocation4], 24
    %v549 = vld [vmem:[%s548] sm:$0xff]
    %551 = vrot.lane.b32.xlu0 %v526, 80
    %v552 = vpop.permute.xlu0 %551
    %v554 = vsel %vm102, %v549, %v552
    %v556 = vsel %vm104, %v554, 0
    %558 = vmatprep.subr.mxu0 %v82
    %559 = vmatpush1.msra.mxu0 %v81
    %560 = vmatprep.subr.mxu0 %v84
    %561 = vmatpush1.msra.mxu0 %v83
    %562 = vmatprep.subr.mxu0 %v86
    %563 = vmatpush1.msra.mxu0 %v85
    %564 = vmatprep.subr.mxu0 %v88
    %565 = vmatpush1.msra.mxu0 %v87
    %566 = vmatprep.subr.mxu0 %v90
    %567 = vmatpush1.msra.mxu0 %v89
    %568 = vmatprep.subr.mxu0 %v92
    %569 = vmatpush1.msra.mxu0 %v91
    %570 = vmatprep.subr.mxu0 0.0
    %571 = vmatpush1.msra.mxu0 0.0
    %572 = vmatprep.subr.mxu0 0.0
    %573 = vmatpush1.msra.mxu0 0.0
    %574 = vmatprep.subr.mxu0 0.0
    %575 = vmatpush1.msra.mxu0 0.0
    %576 = vmatprep.subr.mxu0 0.0
    %577 = vmatpush1.msra.mxu0 0.0
    %578 = vmatprep.subr.mxu0 0.0
    %579 = vmatpush1.msra.mxu0 0.0
    %580 = vmatprep.subr.mxu0 0.0
    %581 = vmatpush1.msra.mxu0 0.0
    %582 = vmatprep.subr.mxu0 0.0
    %583 = vmatpush1.msra.mxu0 0.0
    %584 = vmatprep.subr.mxu0 0.0
    %585 = vmatpush1.msra.mxu0 0.0
    %586 = vmatprep.subr.mxu0 0.0
    %587 = vmatpush1.msra.mxu0 0.0
    %588 = vmatprep.subr.mxu0 0.0
    %589 = vmatpush1.msra.mxu0 0.0
    %590 = vmatprep.subr.mxu0 0.0
    %591 = vmatpush1.msra.mxu0 0.0
    %592 = vmatprep.subr.mxu0 0.0
    %593 = vmatpush1.msra.mxu0 0.0
    %594 = vmatprep.subr.mxu0 0.0
    %595 = vmatpush1.msra.mxu0 0.0
    %596 = vmatprep.subr.mxu0 0.0
    %597 = vmatpush1.msra.mxu0 0.0
    %598 = vmatprep.subr.mxu0 0.0
    %599 = vmatpush1.msra.mxu0 0.0
    %600 = vmatprep.subr.mxu0 0.0
    %601 = vmatpush1.msra.mxu0 0.0
    %602 = vmatprep.subr.mxu0 0.0
    %603 = vmatpush1.msra.mxu0 0.0
    %604 = vmatprep.subr.mxu0 0.0
    %605 = vmatpush1.msra.mxu0 0.0
    %606 = vmatprep.subr.mxu0 0.0
    %607 = vmatpush1.msra.mxu0 0.0
    %608 = vmatprep.subr.mxu0 0.0
    %609 = vmatpush1.msra.mxu0 0.0
    %610 = vmatprep.subr.mxu0 0.0
    %611 = vmatpush1.msra.mxu0 0.0
    %612 = vmatprep.subr.mxu0 0.0
    %613 = vmatpush1.msra.mxu0 0.0
    %614 = vmatprep.subr.mxu0 0.0
    %615 = vmatpush1.msra.mxu0 0.0
    %616 = vmatprep.subr.mxu0 0.0
    %617 = vmatpush1.msra.mxu0 0.0
    %618 = vmatprep.subr.mxu0 0.0
    %619 = vmatpush1.msra.mxu0 0.0
    %620 = vmatprep.subr.mxu0 0.0
    %621 = vmatpush1.msra.mxu0 0.0
    %622 = vmatprep.mubr.f32.mxu0 0.0
    %623 = vmatmul.mubr.f32.gmra.mrb[0].mxu0 %v556
    %v624 = vpop.f32.mrb[0].mxu0
    %v625 = vadd.f32 %v93, %v624
    %v626 = vpop.f32.mrb[0].mxu0
    %v627 = vadd.f32 %v94, %v626
    %628 = vdwg.mxu0
    %v629 = vtanh.pop %v625
    %v630 = vxor.u32 %v625, 2147483648
    %v631 = vxor.u32 %v627, 2147483648
    %v632 = vmul.f32 %v630, 1.442695
    %v633 = vpow.pop %v632
    %v634 = vmul.f32 %v631, 1.442695
    %v635 = vpow.pop %v634
    %v636 = vadd.f32 %v633, 1.0
    %v637 = vadd.f32 %v635, 1.0
    %v638 = vrcp.pop %v636
    %v639 = vmul.f32 1.0, %v638
    %v640 = vrcp.pop %v637
    %v641 = vmul.f32 1.0, %v640
    %v642 = vadd.f32 %v629, 1.0
    %v643 = vmul.f32 %v642, 1.5
    %v644 = vmul.f32 %v639, 0.7
    %v645 = vadd.f32 %v644, 0.3
    %v646 = vmul.f32 %v639, 0.03
    %v647 = vadd.f32 %v641, 1.0
    %v648 = vsub.f32 1.0, %v645
    %v649 = vmul.f32 %v648, %v526
    %650 = vrot.lane.b32.xlu0 %v526, 96
    %v651 = vpop.permute.xlu0 %650
    %v653 = vmul.f32 %v643, %v651
    %v654 = vmul.f32 %v653, %v651
    %656 = vrot.lane.b32.xlu0 %v654, 96
    %v657 = vpop.permute.xlu0 %656
    %v659 = vadd.f32 %v642, %v657
    %v660 = vsub.f32 %v659, %v545
    %661 = vrot.lane.b32.xlu0 %v526, 64
    %v662 = vpop.permute.xlu0 %661
    %v664 = vmul.f32 %v660, %v662
    %666 = vrot.lane.b32.xlu0 %v664, 32
    %v667 = vpop.permute.xlu0 %666
    %v669 = vadd.f32 %v627, %v667
    %v670 = vtanh.pop %v669
    %672 = vrot.lane.b32.xlu0 %v670, 32
    %v673 = vpop.permute.xlu0 %672
    %v675 = vmul.f32 %v645, %v673
    %v676 = vadd.f32 %v649, %v675
    %v677 = vsub.f32 1.0, %v646
    %679 = vrot.lane.b32.xlu0 %v677, 32
    %v680 = vpop.permute.xlu0 %679
    %v682 = vmul.f32 %v545, %v680
    %v683 = vmul.f32 %v647, %v662
    %v684 = vmul.f32 %v683, %v683
    %v685 = vmul.f32 %v684, %v684
    %687 = vrot.lane.b32.xlu0 %v685, 96
    %v688 = vpop.permute.xlu0 %687
    %v690 = vmul.f32 %v646, %v688
    %692 = vrot.lane.b32.xlu0 %v690, 32
    %v693 = vpop.permute.xlu0 %692
    %v695 = vadd.f32 %v682, %v693
    %697 = vrot.lane.b32.xlu0 %v676, 32
    %v698 = vpop.permute.xlu0 %697
    %vm700 = vcmask 1048320
    %701 = vst.msk [vmem:[#allocation12] sm:$0xff] %vm700, %v698
    %s702 = scalar_lea.vmem [#allocation4], 32
    %v703 = vld [vmem:[%s702] sm:$0xff]
    %704 = vrot.lane.b32.xlu0 %v676, 80
    %v705 = vpop.permute.xlu0 %704
    %v707 = vsel %vm102, %v703, %v705
    %v709 = vsel %vm104, %v707, 0
    %711 = vmatprep.subr.mxu0 %v82
    %712 = vmatpush1.msra.mxu0 %v81
    %713 = vmatprep.subr.mxu0 %v84
    %714 = vmatpush1.msra.mxu0 %v83
    %715 = vmatprep.subr.mxu0 %v86
    %716 = vmatpush1.msra.mxu0 %v85
    %717 = vmatprep.subr.mxu0 %v88
    %718 = vmatpush1.msra.mxu0 %v87
    %719 = vmatprep.subr.mxu0 %v90
    %720 = vmatpush1.msra.mxu0 %v89
    %721 = vmatprep.subr.mxu0 %v92
    %722 = vmatpush1.msra.mxu0 %v91
    %723 = vmatprep.subr.mxu0 0.0
    %724 = vmatpush1.msra.mxu0 0.0
    %725 = vmatprep.subr.mxu0 0.0
    %726 = vmatpush1.msra.mxu0 0.0
    %727 = vmatprep.subr.mxu0 0.0
    %728 = vmatpush1.msra.mxu0 0.0
    %729 = vmatprep.subr.mxu0 0.0
    %730 = vmatpush1.msra.mxu0 0.0
    %731 = vmatprep.subr.mxu0 0.0
    %732 = vmatpush1.msra.mxu0 0.0
    %733 = vmatprep.subr.mxu0 0.0
    %734 = vmatpush1.msra.mxu0 0.0
    %735 = vmatprep.subr.mxu0 0.0
    %736 = vmatpush1.msra.mxu0 0.0
    %737 = vmatprep.subr.mxu0 0.0
    %738 = vmatpush1.msra.mxu0 0.0
    %739 = vmatprep.subr.mxu0 0.0
    %740 = vmatpush1.msra.mxu0 0.0
    %741 = vmatprep.subr.mxu0 0.0
    %742 = vmatpush1.msra.mxu0 0.0
    %743 = vmatprep.subr.mxu0 0.0
    %744 = vmatpush1.msra.mxu0 0.0
    %745 = vmatprep.subr.mxu0 0.0
    %746 = vmatpush1.msra.mxu0 0.0
    %747 = vmatprep.subr.mxu0 0.0
    %748 = vmatpush1.msra.mxu0 0.0
    %749 = vmatprep.subr.mxu0 0.0
    %750 = vmatpush1.msra.mxu0 0.0
    %751 = vmatprep.subr.mxu0 0.0
    %752 = vmatpush1.msra.mxu0 0.0
    %753 = vmatprep.subr.mxu0 0.0
    %754 = vmatpush1.msra.mxu0 0.0
    %755 = vmatprep.subr.mxu0 0.0
    %756 = vmatpush1.msra.mxu0 0.0
    %757 = vmatprep.subr.mxu0 0.0
    %758 = vmatpush1.msra.mxu0 0.0
    %759 = vmatprep.subr.mxu0 0.0
    %760 = vmatpush1.msra.mxu0 0.0
    %761 = vmatprep.subr.mxu0 0.0
    %762 = vmatpush1.msra.mxu0 0.0
    %763 = vmatprep.subr.mxu0 0.0
    %764 = vmatpush1.msra.mxu0 0.0
    %765 = vmatprep.subr.mxu0 0.0
    %766 = vmatpush1.msra.mxu0 0.0
    %767 = vmatprep.subr.mxu0 0.0
    %768 = vmatpush1.msra.mxu0 0.0
    %769 = vmatprep.subr.mxu0 0.0
    %770 = vmatpush1.msra.mxu0 0.0
    %771 = vmatprep.subr.mxu0 0.0
    %772 = vmatpush1.msra.mxu0 0.0
    %773 = vmatprep.subr.mxu0 0.0
    %774 = vmatpush1.msra.mxu0 0.0
    %775 = vmatprep.mubr.f32.mxu0 0.0
    %776 = vmatmul.mubr.f32.gmra.mrb[0].mxu0 %v709
    %v777 = vpop.f32.mrb[0].mxu0
    %v778 = vadd.f32 %v93, %v777
    %v779 = vpop.f32.mrb[0].mxu0
    %v780 = vadd.f32 %v94, %v779
    %781 = vdwg.mxu0
    %v782 = vtanh.pop %v778
    %v783 = vxor.u32 %v778, 2147483648
    %v784 = vxor.u32 %v780, 2147483648
    %v785 = vmul.f32 %v783, 1.442695
    %v786 = vpow.pop %v785
    %v787 = vmul.f32 %v784, 1.442695
    %v788 = vpow.pop %v787
    %v789 = vadd.f32 %v786, 1.0
    %v790 = vadd.f32 %v788, 1.0
    %v791 = vrcp.pop %v789
    %v792 = vmul.f32 1.0, %v791
    %v793 = vrcp.pop %v790
    %v794 = vmul.f32 1.0, %v793
    %v795 = vadd.f32 %v782, 1.0
    %v796 = vmul.f32 %v795, 1.5
    %v797 = vmul.f32 %v792, 0.7
    %v798 = vadd.f32 %v797, 0.3
    %v799 = vmul.f32 %v792, 0.03
    %v800 = vadd.f32 %v794, 1.0
    %v801 = vsub.f32 1.0, %v798
    %v802 = vmul.f32 %v801, %v676
    %803 = vrot.lane.b32.xlu0 %v676, 96
    %v804 = vpop.permute.xlu0 %803
    %v806 = vmul.f32 %v796, %v804
    %v807 = vmul.f32 %v806, %v804
    %809 = vrot.lane.b32.xlu0 %v807, 96
    %v810 = vpop.permute.xlu0 %809
    %v812 = vadd.f32 %v795, %v810
    %v813 = vsub.f32 %v812, %v695
    %814 = vrot.lane.b32.xlu0 %v676, 64
    %v815 = vpop.permute.xlu0 %814
    %v817 = vmul.f32 %v813, %v815
    %819 = vrot.lane.b32.xlu0 %v817, 32
    %v820 = vpop.permute.xlu0 %819
    %v822 = vadd.f32 %v780, %v820
    %v823 = vtanh.pop %v822
    %825 = vrot.lane.b32.xlu0 %v823, 32
    %v826 = vpop.permute.xlu0 %825
    %v828 = vmul.f32 %v798, %v826
    %v829 = vadd.f32 %v802, %v828
    %v830 = vsub.f32 1.0, %v799
    %832 = vrot.lane.b32.xlu0 %v830, 32
    %v833 = vpop.permute.xlu0 %832
    %v835 = vmul.f32 %v695, %v833
    %v836 = vmul.f32 %v800, %v815
    %v837 = vmul.f32 %v836, %v836
    %v838 = vmul.f32 %v837, %v837
    %840 = vrot.lane.b32.xlu0 %v838, 96
    %v841 = vpop.permute.xlu0 %840
    %v843 = vmul.f32 %v799, %v841
    %845 = vrot.lane.b32.xlu0 %v843, 32
    %v846 = vpop.permute.xlu0 %845
    %v848 = vadd.f32 %v835, %v846
    %850 = vrot.lane.b32.xlu0 %v829, 64
    %v851 = vpop.permute.xlu0 %850
    %853 = vst.msk [vmem:[#allocation12 + $0x8] sm:$0xff] %vm250, %v851
    %s854 = scalar_lea.vmem [#allocation4], 40
    %v855 = vld [vmem:[%s854] sm:$0xff]
    %856 = vrot.lane.b32.xlu0 %v829, 80
    %v857 = vpop.permute.xlu0 %856
    %v859 = vsel %vm102, %v855, %v857
    %v861 = vsel %vm104, %v859, 0
    %863 = vmatprep.subr.mxu0 %v82
    %864 = vmatpush1.msra.mxu0 %v81
    %865 = vmatprep.subr.mxu0 %v84
    %866 = vmatpush1.msra.mxu0 %v83
    %867 = vmatprep.subr.mxu0 %v86
    %868 = vmatpush1.msra.mxu0 %v85
    %869 = vmatprep.subr.mxu0 %v88
    %870 = vmatpush1.msra.mxu0 %v87
    %871 = vmatprep.subr.mxu0 %v90
    %872 = vmatpush1.msra.mxu0 %v89
    %873 = vmatprep.subr.mxu0 %v92
    %874 = vmatpush1.msra.mxu0 %v91
    %875 = vmatprep.subr.mxu0 0.0
    %876 = vmatpush1.msra.mxu0 0.0
    %877 = vmatprep.subr.mxu0 0.0
    %878 = vmatpush1.msra.mxu0 0.0
    %879 = vmatprep.subr.mxu0 0.0
    %880 = vmatpush1.msra.mxu0 0.0
    %881 = vmatprep.subr.mxu0 0.0
    %882 = vmatpush1.msra.mxu0 0.0
    %883 = vmatprep.subr.mxu0 0.0
    %884 = vmatpush1.msra.mxu0 0.0
    %885 = vmatprep.subr.mxu0 0.0
    %886 = vmatpush1.msra.mxu0 0.0
    %887 = vmatprep.subr.mxu0 0.0
    %888 = vmatpush1.msra.mxu0 0.0
    %889 = vmatprep.subr.mxu0 0.0
    %890 = vmatpush1.msra.mxu0 0.0
    %891 = vmatprep.subr.mxu0 0.0
    %892 = vmatpush1.msra.mxu0 0.0
    %893 = vmatprep.subr.mxu0 0.0
    %894 = vmatpush1.msra.mxu0 0.0
    %895 = vmatprep.subr.mxu0 0.0
    %896 = vmatpush1.msra.mxu0 0.0
    %897 = vmatprep.subr.mxu0 0.0
    %898 = vmatpush1.msra.mxu0 0.0
    %899 = vmatprep.subr.mxu0 0.0
    %900 = vmatpush1.msra.mxu0 0.0
    %901 = vmatprep.subr.mxu0 0.0
    %902 = vmatpush1.msra.mxu0 0.0
    %903 = vmatprep.subr.mxu0 0.0
    %904 = vmatpush1.msra.mxu0 0.0
    %905 = vmatprep.subr.mxu0 0.0
    %906 = vmatpush1.msra.mxu0 0.0
    %907 = vmatprep.subr.mxu0 0.0
    %908 = vmatpush1.msra.mxu0 0.0
    %909 = vmatprep.subr.mxu0 0.0
    %910 = vmatpush1.msra.mxu0 0.0
    %911 = vmatprep.subr.mxu0 0.0
    %912 = vmatpush1.msra.mxu0 0.0
    %913 = vmatprep.subr.mxu0 0.0
    %914 = vmatpush1.msra.mxu0 0.0
    %915 = vmatprep.subr.mxu0 0.0
    %916 = vmatpush1.msra.mxu0 0.0
    %917 = vmatprep.subr.mxu0 0.0
    %918 = vmatpush1.msra.mxu0 0.0
    %919 = vmatprep.subr.mxu0 0.0
    %920 = vmatpush1.msra.mxu0 0.0
    %921 = vmatprep.subr.mxu0 0.0
    %922 = vmatpush1.msra.mxu0 0.0
    %923 = vmatprep.subr.mxu0 0.0
    %924 = vmatpush1.msra.mxu0 0.0
    %925 = vmatprep.subr.mxu0 0.0
    %926 = vmatpush1.msra.mxu0 0.0
    %927 = vmatprep.mubr.f32.mxu0 0.0
    %928 = vmatmul.mubr.f32.gmra.mrb[0].mxu0 %v861
    %v929 = vpop.f32.mrb[0].mxu0
    %v930 = vadd.f32 %v93, %v929
    %v931 = vpop.f32.mrb[0].mxu0
    %v932 = vadd.f32 %v94, %v931
    %933 = vdwg.mxu0
    %v934 = vtanh.pop %v930
    %v935 = vxor.u32 %v930, 2147483648
    %v936 = vxor.u32 %v932, 2147483648
    %v937 = vmul.f32 %v935, 1.442695
    %v938 = vpow.pop %v937
    %v939 = vmul.f32 %v936, 1.442695
    %v940 = vpow.pop %v939
    %v941 = vadd.f32 %v938, 1.0
    %v942 = vadd.f32 %v940, 1.0
    %v943 = vrcp.pop %v941
    %v944 = vmul.f32 1.0, %v943
    %v945 = vrcp.pop %v942
    %v946 = vmul.f32 1.0, %v945
    %v947 = vadd.f32 %v934, 1.0
    %v948 = vmul.f32 %v947, 1.5
    %v949 = vmul.f32 %v944, 0.7
    %v950 = vadd.f32 %v949, 0.3
    %v951 = vmul.f32 %v944, 0.03
    %v952 = vadd.f32 %v946, 1.0
    %v953 = vsub.f32 1.0, %v950
    %v954 = vmul.f32 %v953, %v829
    %955 = vrot.lane.b32.xlu0 %v829, 96
    %v956 = vpop.permute.xlu0 %955
    %v958 = vmul.f32 %v948, %v956
    %v959 = vmul.f32 %v958, %v956
    %961 = vrot.lane.b32.xlu0 %v959, 96
    %v962 = vpop.permute.xlu0 %961
    %v964 = vadd.f32 %v947, %v962
    %v965 = vsub.f32 %v964, %v848
    %v966 = vmul.f32 %v965, %v851
    %968 = vrot.lane.b32.xlu0 %v966, 32
    %v969 = vpop.permute.xlu0 %968
    %v971 = vadd.f32 %v932, %v969
    %v972 = vtanh.pop %v971
    %974 = vrot.lane.b32.xlu0 %v972, 32
    %v975 = vpop.permute.xlu0 %974
    %v977 = vmul.f32 %v950, %v975
    %v978 = vadd.f32 %v954, %v977
    %v979 = vsub.f32 1.0, %v951
    %981 = vrot.lane.b32.xlu0 %v979, 32
    %v982 = vpop.permute.xlu0 %981
    %v984 = vmul.f32 %v848, %v982
    %v985 = vmul.f32 %v952, %v851
    %v986 = vmul.f32 %v985, %v985
    %v987 = vmul.f32 %v986, %v986
    %989 = vrot.lane.b32.xlu0 %v987, 96
    %v990 = vpop.permute.xlu0 %989
    %v992 = vmul.f32 %v951, %v990
    %994 = vrot.lane.b32.xlu0 %v992, 32
    %v995 = vpop.permute.xlu0 %994
    %v997 = vadd.f32 %v984, %v995
    %999 = vrot.lane.b32.xlu0 %v978, 96
    %v1000 = vpop.permute.xlu0 %999
    %1002 = vst.msk [vmem:[#allocation12 + $0x8] sm:$0xff] %vm400, %v1000
    %s1003 = scalar_lea.vmem [#allocation4], 48
    %v1004 = vld [vmem:[%s1003] sm:$0xff]
    %1005 = vrot.lane.b32.xlu0 %v978, 80
    %v1006 = vpop.permute.xlu0 %1005
    %v1008 = vsel %vm102, %v1004, %v1006
    %v1010 = vsel %vm104, %v1008, 0
    %1012 = vmatprep.subr.mxu0 %v82
    %1013 = vmatpush1.msra.mxu0 %v81
    %1014 = vmatprep.subr.mxu0 %v84
    %1015 = vmatpush1.msra.mxu0 %v83
    %1016 = vmatprep.subr.mxu0 %v86
    %1017 = vmatpush1.msra.mxu0 %v85
    %1018 = vmatprep.subr.mxu0 %v88
    %1019 = vmatpush1.msra.mxu0 %v87
    %1020 = vmatprep.subr.mxu0 %v90
    %1021 = vmatpush1.msra.mxu0 %v89
    %1022 = vmatprep.subr.mxu0 %v92
    %1023 = vmatpush1.msra.mxu0 %v91
    %1024 = vmatprep.subr.mxu0 0.0
    %1025 = vmatpush1.msra.mxu0 0.0
    %1026 = vmatprep.subr.mxu0 0.0
    %1027 = vmatpush1.msra.mxu0 0.0
    %1028 = vmatprep.subr.mxu0 0.0
    %1029 = vmatpush1.msra.mxu0 0.0
    %1030 = vmatprep.subr.mxu0 0.0
    %1031 = vmatpush1.msra.mxu0 0.0
    %1032 = vmatprep.subr.mxu0 0.0
    %1033 = vmatpush1.msra.mxu0 0.0
    %1034 = vmatprep.subr.mxu0 0.0
    %1035 = vmatpush1.msra.mxu0 0.0
    %1036 = vmatprep.subr.mxu0 0.0
    %1037 = vmatpush1.msra.mxu0 0.0
    %1038 = vmatprep.subr.mxu0 0.0
    %1039 = vmatpush1.msra.mxu0 0.0
    %1040 = vmatprep.subr.mxu0 0.0
    %1041 = vmatpush1.msra.mxu0 0.0
    %1042 = vmatprep.subr.mxu0 0.0
    %1043 = vmatpush1.msra.mxu0 0.0
    %1044 = vmatprep.subr.mxu0 0.0
    %1045 = vmatpush1.msra.mxu0 0.0
    %1046 = vmatprep.subr.mxu0 0.0
    %1047 = vmatpush1.msra.mxu0 0.0
    %1048 = vmatprep.subr.mxu0 0.0
    %1049 = vmatpush1.msra.mxu0 0.0
    %1050 = vmatprep.subr.mxu0 0.0
    %1051 = vmatpush1.msra.mxu0 0.0
    %1052 = vmatprep.subr.mxu0 0.0
    %1053 = vmatpush1.msra.mxu0 0.0
    %1054 = vmatprep.subr.mxu0 0.0
    %1055 = vmatpush1.msra.mxu0 0.0
    %1056 = vmatprep.subr.mxu0 0.0
    %1057 = vmatpush1.msra.mxu0 0.0
    %1058 = vmatprep.subr.mxu0 0.0
    %1059 = vmatpush1.msra.mxu0 0.0
    %1060 = vmatprep.subr.mxu0 0.0
    %1061 = vmatpush1.msra.mxu0 0.0
    %1062 = vmatprep.subr.mxu0 0.0
    %1063 = vmatpush1.msra.mxu0 0.0
    %1064 = vmatprep.subr.mxu0 0.0
    %1065 = vmatpush1.msra.mxu0 0.0
    %1066 = vmatprep.subr.mxu0 0.0
    %1067 = vmatpush1.msra.mxu0 0.0
    %1068 = vmatprep.subr.mxu0 0.0
    %1069 = vmatpush1.msra.mxu0 0.0
    %1070 = vmatprep.subr.mxu0 0.0
    %1071 = vmatpush1.msra.mxu0 0.0
    %1072 = vmatprep.subr.mxu0 0.0
    %1073 = vmatpush1.msra.mxu0 0.0
    %1074 = vmatprep.subr.mxu0 0.0
    %1075 = vmatpush1.msra.mxu0 0.0
    %1076 = vmatprep.mubr.f32.mxu0 0.0
    %1077 = vmatmul.mubr.f32.gmra.mrb[0].mxu0 %v1010
    %v1078 = vpop.f32.mrb[0].mxu0
    %v1079 = vadd.f32 %v93, %v1078
    %v1080 = vpop.f32.mrb[0].mxu0
    %v1081 = vadd.f32 %v94, %v1080
    %1082 = vdwg.mxu0
    %v1083 = vtanh.pop %v1079
    %v1084 = vxor.u32 %v1079, 2147483648
    %v1085 = vxor.u32 %v1081, 2147483648
    %v1086 = vmul.f32 %v1084, 1.442695
    %v1087 = vpow.pop %v1086
    %v1088 = vmul.f32 %v1085, 1.442695
    %v1089 = vpow.pop %v1088
    %v1090 = vadd.f32 %v1087, 1.0
    %v1091 = vadd.f32 %v1089, 1.0
    %v1092 = vrcp.pop %v1090
    %v1093 = vmul.f32 1.0, %v1092
    %v1094 = vrcp.pop %v1091
    %v1095 = vmul.f32 1.0, %v1094
    %v1096 = vadd.f32 %v1083, 1.0
    %v1097 = vmul.f32 %v1096, 1.5
    %v1098 = vmul.f32 %v1093, 0.7
    %v1099 = vadd.f32 %v1098, 0.3
    %v1100 = vmul.f32 %v1093, 0.03
    %v1101 = vadd.f32 %v1095, 1.0
    %v1102 = vsub.f32 1.0, %v1099
    %v1103 = vmul.f32 %v1102, %v978
    %v1104 = vmul.f32 %v1097, %v1000
    %v1105 = vmul.f32 %v1104, %v1000
    %1107 = vrot.lane.b32.xlu0 %v1105, 96
    %v1108 = vpop.permute.xlu0 %1107
    %v1110 = vadd.f32 %v1096, %v1108
    %v1111 = vsub.f32 %v1110, %v997
    %1112 = vrot.lane.b32.xlu0 %v978, 64
    %v1113 = vpop.permute.xlu0 %1112
    %v1115 = vmul.f32 %v1111, %v1113
    %1117 = vrot.lane.b32.xlu0 %v1115, 32
    %v1118 = vpop.permute.xlu0 %1117
    %v1120 = vadd.f32 %v1081, %v1118
    %v1121 = vtanh.pop %v1120
    %1123 = vrot.lane.b32.xlu0 %v1121, 32
    %v1124 = vpop.permute.xlu0 %1123
    %v1126 = vmul.f32 %v1099, %v1124
    %v1127 = vadd.f32 %v1103, %v1126
    %v1128 = vsub.f32 1.0, %v1100
    %1130 = vrot.lane.b32.xlu0 %v1128, 32
    %v1131 = vpop.permute.xlu0 %1130
    %v1133 = vmul.f32 %v997, %v1131
    %v1134 = vmul.f32 %v1101, %v1113
    %v1135 = vmul.f32 %v1134, %v1134
    %v1136 = vmul.f32 %v1135, %v1135
    %1138 = vrot.lane.b32.xlu0 %v1136, 96
    %v1139 = vpop.permute.xlu0 %1138
    %v1141 = vmul.f32 %v1100, %v1139
    %1143 = vrot.lane.b32.xlu0 %v1141, 32
    %v1144 = vpop.permute.xlu0 %1143
    %v1146 = vadd.f32 %v1133, %v1144
    %1147 = vst.msk [vmem:[#allocation12 + $0x8] sm:$0xff] %vm546, %v1127
    %s1148 = scalar_lea.vmem [#allocation4], 56
    %v1149 = vld [vmem:[%s1148] sm:$0xff]
    %1151 = vrot.lane.b32.xlu0 %v1127, 80
    %v1152 = vpop.permute.xlu0 %1151
    %v1154 = vsel %vm102, %v1149, %v1152
    %v1156 = vsel %vm104, %v1154, 0
    %1158 = vmatprep.subr.mxu0 %v82
    %1159 = vmatpush1.msra.mxu0 %v81
    %1160 = vmatprep.subr.mxu0 %v84
    %1161 = vmatpush1.msra.mxu0 %v83
    %1162 = vmatprep.subr.mxu0 %v86
    %1163 = vmatpush1.msra.mxu0 %v85
    %1164 = vmatprep.subr.mxu0 %v88
    %1165 = vmatpush1.msra.mxu0 %v87
    %1166 = vmatprep.subr.mxu0 %v90
    %1167 = vmatpush1.msra.mxu0 %v89
    %1168 = vmatprep.subr.mxu0 %v92
    %1169 = vmatpush1.msra.mxu0 %v91
    %1170 = vmatprep.subr.mxu0 0.0
    %1171 = vmatpush1.msra.mxu0 0.0
    %1172 = vmatprep.subr.mxu0 0.0
    %1173 = vmatpush1.msra.mxu0 0.0
    %1174 = vmatprep.subr.mxu0 0.0
    %1175 = vmatpush1.msra.mxu0 0.0
    %1176 = vmatprep.subr.mxu0 0.0
    %1177 = vmatpush1.msra.mxu0 0.0
    %1178 = vmatprep.subr.mxu0 0.0
    %1179 = vmatpush1.msra.mxu0 0.0
    %1180 = vmatprep.subr.mxu0 0.0
    %1181 = vmatpush1.msra.mxu0 0.0
    %1182 = vmatprep.subr.mxu0 0.0
    %1183 = vmatpush1.msra.mxu0 0.0
    %1184 = vmatprep.subr.mxu0 0.0
    %1185 = vmatpush1.msra.mxu0 0.0
    %1186 = vmatprep.subr.mxu0 0.0
    %1187 = vmatpush1.msra.mxu0 0.0
    %1188 = vmatprep.subr.mxu0 0.0
    %1189 = vmatpush1.msra.mxu0 0.0
    %1190 = vmatprep.subr.mxu0 0.0
    %1191 = vmatpush1.msra.mxu0 0.0
    %1192 = vmatprep.subr.mxu0 0.0
    %1193 = vmatpush1.msra.mxu0 0.0
    %1194 = vmatprep.subr.mxu0 0.0
    %1195 = vmatpush1.msra.mxu0 0.0
    %1196 = vmatprep.subr.mxu0 0.0
    %1197 = vmatpush1.msra.mxu0 0.0
    %1198 = vmatprep.subr.mxu0 0.0
    %1199 = vmatpush1.msra.mxu0 0.0
    %1200 = vmatprep.subr.mxu0 0.0
    %1201 = vmatpush1.msra.mxu0 0.0
    %1202 = vmatprep.subr.mxu0 0.0
    %1203 = vmatpush1.msra.mxu0 0.0
    %1204 = vmatprep.subr.mxu0 0.0
    %1205 = vmatpush1.msra.mxu0 0.0
    %1206 = vmatprep.subr.mxu0 0.0
    %1207 = vmatpush1.msra.mxu0 0.0
    %1208 = vmatprep.subr.mxu0 0.0
    %1209 = vmatpush1.msra.mxu0 0.0
    %1210 = vmatprep.subr.mxu0 0.0
    %1211 = vmatpush1.msra.mxu0 0.0
    %1212 = vmatprep.subr.mxu0 0.0
    %1213 = vmatpush1.msra.mxu0 0.0
    %1214 = vmatprep.subr.mxu0 0.0
    %1215 = vmatpush1.msra.mxu0 0.0
    %1216 = vmatprep.subr.mxu0 0.0
    %1217 = vmatpush1.msra.mxu0 0.0
    %1218 = vmatprep.subr.mxu0 0.0
    %1219 = vmatpush1.msra.mxu0 0.0
    %1220 = vmatprep.subr.mxu0 0.0
    %1221 = vmatpush1.msra.mxu0 0.0
    %1222 = vmatprep.mubr.f32.mxu0 0.0
    %1223 = vmatmul.mubr.f32.gmra.mrb[0].mxu0 %v1156
    %v1224 = vpop.f32.mrb[0].mxu0
    %v1225 = vadd.f32 %v93, %v1224
    %v1226 = vpop.f32.mrb[0].mxu0
    %v1227 = vadd.f32 %v94, %v1226
    %1228 = vdwg.mxu0
    %v1229 = vtanh.pop %v1225
    %v1230 = vxor.u32 %v1225, 2147483648
    %v1231 = vxor.u32 %v1227, 2147483648
    %v1232 = vmul.f32 %v1230, 1.442695
    %v1233 = vpow.pop %v1232
    %v1234 = vmul.f32 %v1231, 1.442695
    %v1235 = vpow.pop %v1234
    %v1236 = vadd.f32 %v1233, 1.0
    %v1237 = vadd.f32 %v1235, 1.0
    %v1238 = vrcp.pop %v1236
    %v1239 = vmul.f32 1.0, %v1238
    %v1240 = vrcp.pop %v1237
    %v1241 = vmul.f32 1.0, %v1240
    %v1242 = vadd.f32 %v1229, 1.0
    %v1243 = vmul.f32 %v1242, 1.5
    %v1244 = vmul.f32 %v1239, 0.7
    %v1245 = vadd.f32 %v1244, 0.3
    %v1246 = vmul.f32 %v1239, 0.03
    %v1247 = vadd.f32 %v1241, 1.0
    %v1248 = vsub.f32 1.0, %v1245
    %v1249 = vmul.f32 %v1248, %v1127
    %1250 = vrot.lane.b32.xlu0 %v1127, 96
    %v1251 = vpop.permute.xlu0 %1250
    %v1253 = vmul.f32 %v1243, %v1251
    %v1254 = vmul.f32 %v1253, %v1251
    %1256 = vrot.lane.b32.xlu0 %v1254, 96
    %v1257 = vpop.permute.xlu0 %1256
    %v1259 = vadd.f32 %v1242, %v1257
    %v1260 = vsub.f32 %v1259, %v1146
    %1261 = vrot.lane.b32.xlu0 %v1127, 64
    %v1262 = vpop.permute.xlu0 %1261
    %v1264 = vmul.f32 %v1260, %v1262
    %1266 = vrot.lane.b32.xlu0 %v1264, 32
    %v1267 = vpop.permute.xlu0 %1266
    %v1269 = vadd.f32 %v1227, %v1267
    %v1270 = vtanh.pop %v1269
    %1272 = vrot.lane.b32.xlu0 %v1270, 32
    %v1273 = vpop.permute.xlu0 %1272
    %v1275 = vmul.f32 %v1245, %v1273
    %v1276 = vadd.f32 %v1249, %v1275
    %v1277 = vsub.f32 1.0, %v1246
    %1279 = vrot.lane.b32.xlu0 %v1277, 32
    %v1280 = vpop.permute.xlu0 %1279
    %v1282 = vmul.f32 %v1146, %v1280
    %v1283 = vmul.f32 %v1247, %v1262
    %v1284 = vmul.f32 %v1283, %v1283
    %v1285 = vmul.f32 %v1284, %v1284
    %1287 = vrot.lane.b32.xlu0 %v1285, 96
    %v1288 = vpop.permute.xlu0 %1287
    %v1290 = vmul.f32 %v1246, %v1288
    %1292 = vrot.lane.b32.xlu0 %v1290, 32
    %v1293 = vpop.permute.xlu0 %1292
    %v1295 = vadd.f32 %v1282, %v1293
    %1297 = vrot.lane.b32.xlu0 %v1276, 32
    %v1298 = vpop.permute.xlu0 %1297
    %1300 = vst.msk [vmem:[#allocation12 + $0x8] sm:$0xff] %vm700, %v1298
    %1301 = vrot.lane.b32.xlu0 %v1276, 64
    %v1302 = vpop.permute.xlu0 %1301
    %1304 = vst.msk [vmem:[#allocation2] sm:$0xff] %vm250, %v1302
    %1305 = vst.msk [vmem:[#allocation3] sm:$0xff] %vm250, %v1295
    // Predicated region
    $region38: #{tpu_custom_call.1} parent=1 // pred_check
      _
    $region39: #{tpu_custom_call.1} parent=1 // pred_check_branch
      %1307 = sbr.rel (0) target = $region41
    $region40: #{tpu_custom_call.1} parent=1 // pred_region
      %s1309 = ssub.s32 256, 256
      %1310 = vsyncadd [#allocation6], %s1309
      %s1312 = sshll.u32 [#allocation12], 4
      %s1313 = int_to_ptr.vmem [resolvable:$true] %s1312
      %1315 = dma.vmem_to_hbm [thread:$0]  %s1313, 256, %s4, [#allocation6]
    $region41: #{tpu_custom_call.1} parent=1 // pred_fallthru
      _
    // Predicated region
    $region42: #{tpu_custom_call.1} parent=1 // pred_check
      _
    $region43: #{tpu_custom_call.1} parent=1 // pred_check_branch
      %1317 = sbr.rel (0) target = $region45
    $region44: #{tpu_custom_call.1} parent=1 // pred_region
      %1318 = dma.done [#allocation6], 256
    $region45: #{tpu_custom_call.1} parent=1 // pred_fallthru
      _
    %1319 = vsyncpa [#allocation5], 1
    %1320 = vsyncpa [#allocation8], 1
    %1321 = vsyncpa [#allocation11], 1
    %1322 = vsyncpa [#allocation6], 1

</llo_original>
